<compile_context>
chip_gen: v5e
topology: v5e:2x2
jax: 0.10.0
libtpu: 0.0.40
codegen_flags: <defaults>
</compile_context>

<pallas_src>
import functools

import numpy as np

import jax
import jax.numpy as jnp
from jax.experimental import pallas as pl
from jax.experimental.pallas import tpu as pltpu

# Small-but-lane-dense demo config (module defaults are BATCH_SIZE=512, Nc=25).
ROWS = 8        # check nodes per block
COLS = 8        # variable nodes per block
BATCH = 256     # batch size: multiple of 128 -> TB=128 lane-dense, 2 grid steps
NC = 25         # BP iterations (self.Nc)
HID = 10        # hidden width of the Linear(1,10)->ReLU->Linear(10,1) MLPs


# --------------------------------------------------------------------------- #
# kernel
# --------------------------------------------------------------------------- #
def _gnni_kernel(ca_ref, sa_ref, b2a_ref, cb_ref, sb_ref, b2b_ref,
                 a_src_ref, a_dst_ref, pg_ref,
                 x_src_ref, x_dst_ref, px_ref,
                 out_ref, *, nc, hid, flags_a, flags_b):
    f32 = jnp.float32

    # Hoist all SMEM scalar reads once (outside the loop / MLP bodies).
    ca = [ca_ref[k] for k in range(hid)]
    sa = [sa_ref[k] for k in range(hid)]
    b2a = b2a_ref[0]
    cb = [cb_ref[k] for k in range(hid)]
    sb = [sb_ref[k] for k in range(hid)]
    b2b = b2b_ref[0]

    def edge_mlp(v, c, s, b2, flags):
        # relu(w1*v+b1)*w2  ==  s * max(v+c, 0)   (w1>0)
        #                   ==  s * min(v+c, 0)   (w1<0)
        # with c=b1/w1, s=w1*w2 folded on the host; w1==0 units folded into b2.
        acc = jnp.full_like(v, b2)
        for k in range(hid):
            h = v + c[k]
            h = jnp.maximum(h, 0.0) if flags[k] else jnp.minimum(h, 0.0)
            acc = acc + h * s[k]
        return acc

    def body(_, m):
        # ggc1 : m1/2 = 0.5*(A_src - I) @ m + 0.5*x_src   (0.5 folded host-side)
        t = jnp.tanh(jnp.dot(a_src_ref[...], m, preferred_element_type=f32)
                     + x_src_ref[...])
        # ggc2 : agg = (A_dst - I) @ t ; m <- MLP(agg)*x_dst + m   (residual)
        agg = jnp.dot(a_dst_ref[...], t, preferred_element_type=f32)
        return edge_mlp(agg, ca, sa, b2a, flags_a) * x_dst_ref[...] + m

    m0 = jnp.zeros(x_src_ref.shape, f32)
    m = jax.lax.fori_loop(0, nc, body, m0)

    # readout: scatter_add onto check nodes (+x), MLP, sigmoid(-o)
    tmp = jnp.dot(pg_ref[...], m, preferred_element_type=f32) + px_ref[...]
    o = edge_mlp(tmp, cb, sb, b2b, flags_b)
    # sign-stable sigmoid(-o); exp and the approx reciprocal use the EUP slot.
    z = jnp.exp(-jnp.abs(o))
    inv = pl.reciprocal(1.0 + z, approx=True)
    out_ref[...] = jnp.where(o >= 0.0, z * inv, inv)


# --------------------------------------------------------------------------- #
# host-side one-time precompute (call once per graph/model, cache the result)
# --------------------------------------------------------------------------- #
def _fold_mlp(w1, b1, w2, b2):
    """Fold Linear(1,H)->ReLU->Linear(H,1) into (c, s, b2_eff, sign flags)."""
    w1 = np.asarray(w1, np.float64).reshape(-1)
    b1 = np.asarray(b1, np.float64).reshape(-1)
    w2 = np.asarray(w2, np.float64).reshape(-1)
    b2 = float(np.asarray(b2, np.float64).reshape(-1)[0])
    nz = w1 != 0.0
    c = np.where(nz, b1 / np.where(nz, w1, 1.0), 0.0)
    s = np.where(nz, w1 * w2, 0.0)
    b2_eff = b2 + float(np.sum(np.where(~nz, np.maximum(b1, 0.0) * w2, 0.0)))
    flags = tuple(bool(v) for v in (w1 > 0.0))
    return (jnp.asarray(c, jnp.float32), jnp.asarray(s, jnp.float32),
            jnp.asarray([b2_eff], jnp.float32), flags)


def prepare_gnni(edge_index, params, *, batch=BATCH, rows=ROWS, cols=COLS,
                 nc=NC, check_structure=True):
    """One-time static precompute. Must be called with concrete (non-traced)
    edge_index / params, outside jit; the returned prep can be reused per call."""
    f32 = jnp.float32
    src_np = np.asarray(edge_index[0]).astype(np.int64)
    dst_np = np.asarray(edge_index[1]).astype(np.int64)
    n_edges = int(src_np.shape[0])
    assert n_edges % batch == 0
    e_blk = n_edges // batch
    blk_nodes = rows + cols

    base = (np.arange(batch, dtype=np.int64) * blk_nodes)[:, None]
    src_l = src_np.reshape(batch, e_blk) - base
    dst_l = dst_np.reshape(batch, e_blk) - base
    if check_structure:
        assert (src_l == src_l[0]).all() and (dst_l == dst_l[0]).all(), \
            "per-batch subgraphs must be identical for the batched relayout"
    src0, dst0 = src_l[0], dst_l[0]

    eye = np.eye(e_blk, dtype=np.float32)
    # 0.5 of tanh(m1/2) folded into the ggc1 operands (bit-exact).
    a_src_half = jnp.asarray(0.5 * ((src0[:, None] == src0[None, :]).astype(np.float32) - eye))
    a_dst = jnp.asarray((dst0[:, None] == dst0[None, :]).astype(np.float32) - eye)
    pg = jnp.asarray((np.arange(rows)[:, None] == src0[None, :]).astype(np.float32))

    check_ids = (np.arange(batch)[:, None] * blk_nodes + np.arange(rows)[None, :]).reshape(-1)

    w1a, b1a, w2a, b2a, w1b, b1b, w2b, b2b = params
    ca, sa, b2a_eff, flags_a = _fold_mlp(w1a, b1a, w2a, b2a)
    cb, sb, b2b_eff, flags_b = _fold_mlp(w1b, b1b, w2b, b2b)

    # batch tiling: TB=128 lane-dense tiles; "parallel" grid shards over TCs.
    tb = min(batch, 128)          # TODO(synk): batches < 128 are lane-sparse
    assert batch % tb == 0
    nb = batch // tb

    smem = pl.BlockSpec(memory_space=pltpu.MemorySpace.SMEM)

    def resident(shape):          # shared operand, constant block across the grid
        return pl.BlockSpec(shape, lambda i: (0, 0))

    def per_batch(rdim):          # (rdim, batch) sliced along the lane axis
        return pl.BlockSpec((rdim, tb), lambda i: (0, i))

    call = pl.pallas_call(
        functools.partial(_gnni_kernel, nc=nc, hid=int(np.asarray(w1a).size),
                          flags_a=flags_a, flags_b=flags_b),
        out_shape=jax.ShapeDtypeStruct((rows, batch), f32),
        grid=(nb,),
        in_specs=[smem] * 6 + [
            resident((e_blk, e_blk)), resident((e_blk, e_blk)), resident((rows, e_blk)),
            per_batch(e_blk), per_batch(e_blk), per_batch(rows),
        ],
        out_specs=per_batch(rows),
        compiler_params=pltpu.CompilerParams(dimension_semantics=("parallel",)),
    )

    return dict(
        batch=batch, rows=rows, e_blk=e_blk,
        src=jnp.asarray(src_np, jnp.int32), dst=jnp.asarray(dst_np, jnp.int32),
        check_ids=jnp.asarray(check_ids, jnp.int32),
        operands=(ca, sa, b2a_eff, cb, sb, b2b_eff, a_src_half, a_dst, pg),
        call=call,
    )


def gnni_apply(prep, x):
    """Per-call (jit-compatible) forward. x: ((rows+cols)*batch, 1) float."""
    f32 = jnp.float32
    batch, rows, e_blk = prep["batch"], prep["rows"], prep["e_blk"]
    xf = x.astype(f32).reshape(-1)
    x_src_half = (0.5 * xf[prep["src"]]).reshape(batch, e_blk).T   # (E_blk, batch)
    x_dst = xf[prep["dst"]].reshape(batch, e_blk).T                # (E_blk, batch)
    px = xf[prep["check_ids"]].reshape(batch, rows).T              # (rows, batch)
    out = prep["call"](*prep["operands"], x_src_half, x_dst, px)   # (rows, batch)
    # back to the module's ((rows*batch), 1) check-row ordering
    return out.T.reshape(-1, 1)


def gnni_forward(x, edge_index, params, **kw):
    """Convenience wrapper: prepare (uncached) + apply."""
    return gnni_apply(prepare_gnni(edge_index, params, **kw), x)


# --------------------------------------------------------------------------- #
# pure-JAX reference (mirrors the PyTorch forward) for the correctness check
# --------------------------------------------------------------------------- #
def gnni_reference(x, edge_index, params, *, batch=BATCH, rows=ROWS, cols=COLS, nc=NC):
    f32 = jnp.float32
    w1a, b1a, w2a, b2a, w1b, b1b, w2b, b2b = [jnp.asarray(p, f32).reshape(-1) for p in params]
    src, dst = edge_index[0], edge_index[1]
    nodes = (rows + cols) * batch
    check_ids = (jnp.arange(batch)[:, None] * (rows + cols)
                 + jnp.arange(rows)[None, :]).reshape(-1)

    def mlp(v, w1, b1, w2, b2):
        h = jnp.maximum(v * w1[None, :] + b1[None, :], 0.0)
        return jnp.sum(h * w2[None, :], axis=1, keepdims=True) + b2

    x = x.astype(f32)
    xs, xd = x[src], x[dst]
    m = jnp.zeros((src.shape[0], 1), f32)
    for _ in range(nc):
        m_p = m
        s1 = jax.ops.segment_sum(m, src, num_segments=nodes)[src]
        m1 = s1 - m + xs
        t = jnp.tanh(m1 * 0.5)
        agg = jax.ops.segment_sum(t, dst, num_segments=nodes)[dst] - t
        m = mlp(agg, w1a, b1a, w2a, b2a) * xd + m_p
    res = jax.ops.segment_sum(m, src, num_segments=nodes) + x
    tmp = res[check_ids]
    o = mlp(tmp, w1b, b1b, w2b, b2b)
    return 1.0 / (1.0 + jnp.exp(o))


# --------------------------------------------------------------------------- #
if __name__ == "__main__":
    key = jax.random.PRNGKey(0)
    kx, k1, k2, k3, k4, k5, k6, k7, k8 = jax.random.split(key, 9)

    nodes = (ROWS + COLS) * BATCH
    x = jax.random.normal(kx, (nodes, 1), dtype=jnp.float32)

    # edge_index (already combined / shifted, as produced inside GNNI.forward):
    # full bipartite check<->variable graph per batch block.
    c_loc = np.repeat(np.arange(ROWS), COLS)              # local check ids
    v_loc = ROWS + np.tile(np.arange(COLS), ROWS)         # local variable ids
    base = (np.arange(BATCH) * (ROWS + COLS))[:, None]
    src = (base + c_loc[None, :]).reshape(-1)
    dst = (base + v_loc[None, :]).reshape(-1)
    edge_index = jnp.asarray(np.stack([src, dst]).astype(np.int32))

    # Deterministic parameter init for ggc2.mlp and GNNI.mlp
    # (ggc1.mlp exists in the module but is never used in the forward pass).
    def vec(k, n, scale=0.5):
        return scale * jax.random.normal(k, (n,), dtype=jnp.float32)

    params = (
        vec(k1, HID), vec(k2, HID), vec(k3, HID), vec(k4, 1),   # ggc2.mlp  w1,b1,w2,b2
        vec(k5, HID), vec(k6, HID), vec(k7, HID), vec(k8, 1),   # GNNI.mlp  w1,b1,w2,b2
    )

    # one-time precompute (structural check + static operands + MLP folding),
    # then a jitted per-call apply (no host syncs / rebuilds on the hot path).
    prep = prepare_gnni(edge_index, params, batch=BATCH, rows=ROWS, cols=COLS, nc=NC)
    run = jax.jit(functools.partial(gnni_apply, prep))

    out = jax.block_until_ready(run(x))

    ref = gnni_reference(x, edge_index, params, batch=BATCH, rows=ROWS, cols=COLS, nc=NC)
    assert out.shape == (ROWS * BATCH, 1), out.shape
    assert bool(jnp.all(jnp.isfinite(out)))
    assert jnp.allclose(out, ref, rtol=2e-3, atol=2e-3), (out, ref)

    print("KERNEL_OK")
</pallas_src>

<mosaic_0001>
module attributes {stable_mosaic.version = 11 : i64} {
  func.func @_gnni_kernel(%arg0: i32, %arg1: memref<10xf32, #tpu.memory_space<smem>>, %arg2: memref<10xf32, #tpu.memory_space<smem>>, %arg3: memref<1xf32, #tpu.memory_space<smem>>, %arg4: memref<10xf32, #tpu.memory_space<smem>>, %arg5: memref<10xf32, #tpu.memory_space<smem>>, %arg6: memref<1xf32, #tpu.memory_space<smem>>, %arg7: memref<64x64xf32, #tpu.memory_space<vmem>>, %arg8: memref<64x64xf32, #tpu.memory_space<vmem>>, %arg9: memref<8x64xf32, #tpu.memory_space<vmem>>, %arg10: memref<64x128xf32, #tpu.memory_space<vmem>>, %arg11: memref<64x128xf32, #tpu.memory_space<vmem>>, %arg12: memref<8x128xf32, #tpu.memory_space<vmem>>, %arg13: memref<8x128xf32, #tpu.memory_space<vmem>>) attributes {dimension_semantics = [#tpu.dimension_semantics<parallel>], iteration_bounds = array<i64: 2>, scalar_prefetch = 0 : i64, scratch_operands = 0 : i64, tpu.core_type = #tpu.core_type<tc>, window_params = [{transform_indices = @transform_0, window_bounds = array<i64: 10>}, {transform_indices = @transform_1, window_bounds = array<i64: 10>}, {transform_indices = @transform_2, window_bounds = array<i64: 1>}, {transform_indices = @transform_3, window_bounds = array<i64: 10>}, {transform_indices = @transform_4, window_bounds = array<i64: 10>}, {transform_indices = @transform_5, window_bounds = array<i64: 1>}, {pipeline_mode = #tpu.pipeline_mode<synchronous>, transform_indices = @transform_6, window_bounds = array<i64: 64, 64>}, {pipeline_mode = #tpu.pipeline_mode<synchronous>, transform_indices = @transform_7, window_bounds = array<i64: 64, 64>}, {pipeline_mode = #tpu.pipeline_mode<synchronous>, transform_indices = @transform_8, window_bounds = array<i64: 8, 64>}, {transform_indices = @transform_9, window_bounds = array<i64: 64, 128>}, {transform_indices = @transform_10, window_bounds = array<i64: 64, 128>}, {transform_indices = @transform_11, window_bounds = array<i64: 8, 128>}, {transform_indices = @transform_12, window_bounds = array<i64: 8, 128>}]} {
    %c0 = arith.constant 0 : index
    %0 = memref.load %arg1[%c0] : memref<10xf32, #tpu.memory_space<smem>>
    %c1 = arith.constant 1 : index
    %1 = memref.load %arg1[%c1] : memref<10xf32, #tpu.memory_space<smem>>
    %c2 = arith.constant 2 : index
    %2 = memref.load %arg1[%c2] : memref<10xf32, #tpu.memory_space<smem>>
    %c3 = arith.constant 3 : index
    %3 = memref.load %arg1[%c3] : memref<10xf32, #tpu.memory_space<smem>>
    %c4 = arith.constant 4 : index
    %4 = memref.load %arg1[%c4] : memref<10xf32, #tpu.memory_space<smem>>
    %c5 = arith.constant 5 : index
    %5 = memref.load %arg1[%c5] : memref<10xf32, #tpu.memory_space<smem>>
    %c6 = arith.constant 6 : index
    %6 = memref.load %arg1[%c6] : memref<10xf32, #tpu.memory_space<smem>>
    %c7 = arith.constant 7 : index
    %7 = memref.load %arg1[%c7] : memref<10xf32, #tpu.memory_space<smem>>
    %c8 = arith.constant 8 : index
    %8 = memref.load %arg1[%c8] : memref<10xf32, #tpu.memory_space<smem>>
    %c9 = arith.constant 9 : index
    %9 = memref.load %arg1[%c9] : memref<10xf32, #tpu.memory_space<smem>>
    %c0_0 = arith.constant 0 : index
    %10 = memref.load %arg2[%c0_0] : memref<10xf32, #tpu.memory_space<smem>>
    %c1_1 = arith.constant 1 : index
    %11 = memref.load %arg2[%c1_1] : memref<10xf32, #tpu.memory_space<smem>>
    %c2_2 = arith.constant 2 : index
    %12 = memref.load %arg2[%c2_2] : memref<10xf32, #tpu.memory_space<smem>>
    %c3_3 = arith.constant 3 : index
    %13 = memref.load %arg2[%c3_3] : memref<10xf32, #tpu.memory_space<smem>>
    %c4_4 = arith.constant 4 : index
    %14 = memref.load %arg2[%c4_4] : memref<10xf32, #tpu.memory_space<smem>>
    %c5_5 = arith.constant 5 : index
    %15 = memref.load %arg2[%c5_5] : memref<10xf32, #tpu.memory_space<smem>>
    %c6_6 = arith.constant 6 : index
    %16 = memref.load %arg2[%c6_6] : memref<10xf32, #tpu.memory_space<smem>>
    %c7_7 = arith.constant 7 : index
    %17 = memref.load %arg2[%c7_7] : memref<10xf32, #tpu.memory_space<smem>>
    %c8_8 = arith.constant 8 : index
    %18 = memref.load %arg2[%c8_8] : memref<10xf32, #tpu.memory_space<smem>>
    %c9_9 = arith.constant 9 : index
    %19 = memref.load %arg2[%c9_9] : memref<10xf32, #tpu.memory_space<smem>>
    %c0_10 = arith.constant 0 : index
    %20 = memref.load %arg3[%c0_10] : memref<1xf32, #tpu.memory_space<smem>>
    %c0_11 = arith.constant 0 : index
    %21 = memref.load %arg4[%c0_11] : memref<10xf32, #tpu.memory_space<smem>>
    %c1_12 = arith.constant 1 : index
    %22 = memref.load %arg4[%c1_12] : memref<10xf32, #tpu.memory_space<smem>>
    %c2_13 = arith.constant 2 : index
    %23 = memref.load %arg4[%c2_13] : memref<10xf32, #tpu.memory_space<smem>>
    %c3_14 = arith.constant 3 : index
    %24 = memref.load %arg4[%c3_14] : memref<10xf32, #tpu.memory_space<smem>>
    %c4_15 = arith.constant 4 : index
    %25 = memref.load %arg4[%c4_15] : memref<10xf32, #tpu.memory_space<smem>>
    %c5_16 = arith.constant 5 : index
    %26 = memref.load %arg4[%c5_16] : memref<10xf32, #tpu.memory_space<smem>>
    %c6_17 = arith.constant 6 : index
    %27 = memref.load %arg4[%c6_17] : memref<10xf32, #tpu.memory_space<smem>>
    %c7_18 = arith.constant 7 : index
    %28 = memref.load %arg4[%c7_18] : memref<10xf32, #tpu.memory_space<smem>>
    %c8_19 = arith.constant 8 : index
    %29 = memref.load %arg4[%c8_19] : memref<10xf32, #tpu.memory_space<smem>>
    %c9_20 = arith.constant 9 : index
    %30 = memref.load %arg4[%c9_20] : memref<10xf32, #tpu.memory_space<smem>>
    %c0_21 = arith.constant 0 : index
    %31 = memref.load %arg5[%c0_21] : memref<10xf32, #tpu.memory_space<smem>>
    %c1_22 = arith.constant 1 : index
    %32 = memref.load %arg5[%c1_22] : memref<10xf32, #tpu.memory_space<smem>>
    %c2_23 = arith.constant 2 : index
    %33 = memref.load %arg5[%c2_23] : memref<10xf32, #tpu.memory_space<smem>>
    %c3_24 = arith.constant 3 : index
    %34 = memref.load %arg5[%c3_24] : memref<10xf32, #tpu.memory_space<smem>>
    %c4_25 = arith.constant 4 : index
    %35 = memref.load %arg5[%c4_25] : memref<10xf32, #tpu.memory_space<smem>>
    %c5_26 = arith.constant 5 : index
    %36 = memref.load %arg5[%c5_26] : memref<10xf32, #tpu.memory_space<smem>>
    %c6_27 = arith.constant 6 : index
    %37 = memref.load %arg5[%c6_27] : memref<10xf32, #tpu.memory_space<smem>>
    %c7_28 = arith.constant 7 : index
    %38 = memref.load %arg5[%c7_28] : memref<10xf32, #tpu.memory_space<smem>>
    %c8_29 = arith.constant 8 : index
    %39 = memref.load %arg5[%c8_29] : memref<10xf32, #tpu.memory_space<smem>>
    %c9_30 = arith.constant 9 : index
    %40 = memref.load %arg5[%c9_30] : memref<10xf32, #tpu.memory_space<smem>>
    %c0_31 = arith.constant 0 : index
    %41 = memref.load %arg6[%c0_31] : memref<1xf32, #tpu.memory_space<smem>>
    %cst = arith.constant 0.000000e+00 : f32
    %42 = vector.broadcast %cst : f32 to vector<64x128xf32>
    %c0_i32 = arith.constant 0 : i32
    %c25_i32 = arith.constant 25 : i32
    %43 = arith.addi %c0_i32, %c25_i32 : i32
    %c1_i32 = arith.constant 1 : i32
    %44 = scf.for %arg14 = %c0_i32 to %43 step %c1_i32 iter_args(%arg15 = %42) -> (vector<64x128xf32>)  : i32 {
      %c0_52 = arith.constant 0 : index
      %c0_53 = arith.constant 0 : index
      %132 = vector.load %arg7[%c0_52, %c0_53] : memref<64x64xf32, #tpu.memory_space<vmem>>, vector<64x64xf32>
      %cst_54 = arith.constant dense<0.000000e+00> : vector<64x128xf32>
      %133 = tpu.matmul %132, %arg15, %cst_54 {dimension_numbers = #tpu.dot_dimension_numbers<[1], [0], [0], [1], [0, 0, 1, 1], [], []>} : vector<64x64xf32>, vector<64x128xf32>, vector<64x128xf32> -> vector<64x128xf32>
      %c0_55 = arith.constant 0 : index
      %c0_56 = arith.constant 0 : index
      %134 = vector.load %arg10[%c0_55, %c0_56] : memref<64x128xf32, #tpu.memory_space<vmem>>, vector<64x128xf32>
      %135 = arith.addf %133, %134 : vector<64x128xf32>
      %136 = math.tanh %135 : vector<64x128xf32>
      %c0_57 = arith.constant 0 : index
      %c0_58 = arith.constant 0 : index
      %137 = vector.load %arg8[%c0_57, %c0_58] : memref<64x64xf32, #tpu.memory_space<vmem>>, vector<64x64xf32>
      %cst_59 = arith.constant dense<0.000000e+00> : vector<64x128xf32>
      %138 = tpu.matmul %137, %136, %cst_59 {dimension_numbers = #tpu.dot_dimension_numbers<[1], [0], [0], [1], [0, 0, 1, 1], [], []>} : vector<64x64xf32>, vector<64x128xf32>, vector<64x128xf32> -> vector<64x128xf32>
      %139 = vector.broadcast %20 : f32 to vector<64x128xf32>
      %140 = vector.broadcast %0 : f32 to vector<64x128xf32>
      %141 = arith.addf %138, %140 : vector<64x128xf32>
      %cst_60 = arith.constant 0.000000e+00 : f32
      %142 = vector.broadcast %cst_60 : f32 to vector<64x128xf32>
      %143 = arith.minimumf %141, %142 : vector<64x128xf32>
      %144 = vector.broadcast %10 : f32 to vector<64x128xf32>
      %145 = arith.mulf %143, %144 : vector<64x128xf32>
      %146 = arith.addf %139, %145 : vector<64x128xf32>
      %147 = vector.broadcast %1 : f32 to vector<64x128xf32>
      %148 = arith.addf %138, %147 : vector<64x128xf32>
      %cst_61 = arith.constant 0.000000e+00 : f32
      %149 = vector.broadcast %cst_61 : f32 to vector<64x128xf32>
      %150 = arith.minimumf %148, %149 : vector<64x128xf32>
      %151 = vector.broadcast %11 : f32 to vector<64x128xf32>
      %152 = arith.mulf %150, %151 : vector<64x128xf32>
      %153 = arith.addf %146, %152 : vector<64x128xf32>
      %154 = vector.broadcast %2 : f32 to vector<64x128xf32>
      %155 = arith.addf %138, %154 : vector<64x128xf32>
      %cst_62 = arith.constant 0.000000e+00 : f32
      %156 = vector.broadcast %cst_62 : f32 to vector<64x128xf32>
      %157 = arith.maximumf %155, %156 : vector<64x128xf32>
      %158 = vector.broadcast %12 : f32 to vector<64x128xf32>
      %159 = arith.mulf %157, %158 : vector<64x128xf32>
      %160 = arith.addf %153, %159 : vector<64x128xf32>
      %161 = vector.broadcast %3 : f32 to vector<64x128xf32>
      %162 = arith.addf %138, %161 : vector<64x128xf32>
      %cst_63 = arith.constant 0.000000e+00 : f32
      %163 = vector.broadcast %cst_63 : f32 to vector<64x128xf32>
      %164 = arith.minimumf %162, %163 : vector<64x128xf32>
      %165 = vector.broadcast %13 : f32 to vector<64x128xf32>
      %166 = arith.mulf %164, %165 : vector<64x128xf32>
      %167 = arith.addf %160, %166 : vector<64x128xf32>
      %168 = vector.broadcast %4 : f32 to vector<64x128xf32>
      %169 = arith.addf %138, %168 : vector<64x128xf32>
      %cst_64 = arith.constant 0.000000e+00 : f32
      %170 = vector.broadcast %cst_64 : f32 to vector<64x128xf32>
      %171 = arith.minimumf %169, %170 : vector<64x128xf32>
      %172 = vector.broadcast %14 : f32 to vector<64x128xf32>
      %173 = arith.mulf %171, %172 : vector<64x128xf32>
      %174 = arith.addf %167, %173 : vector<64x128xf32>
      %175 = vector.broadcast %5 : f32 to vector<64x128xf32>
      %176 = arith.addf %138, %175 : vector<64x128xf32>
      %cst_65 = arith.constant 0.000000e+00 : f32
      %177 = vector.broadcast %cst_65 : f32 to vector<64x128xf32>
      %178 = arith.minimumf %176, %177 : vector<64x128xf32>
      %179 = vector.broadcast %15 : f32 to vector<64x128xf32>
      %180 = arith.mulf %178, %179 : vector<64x128xf32>
      %181 = arith.addf %174, %180 : vector<64x128xf32>
      %182 = vector.broadcast %6 : f32 to vector<64x128xf32>
      %183 = arith.addf %138, %182 : vector<64x128xf32>
      %cst_66 = arith.constant 0.000000e+00 : f32
      %184 = vector.broadcast %cst_66 : f32 to vector<64x128xf32>
      %185 = arith.minimumf %183, %184 : vector<64x128xf32>
      %186 = vector.broadcast %16 : f32 to vector<64x128xf32>
      %187 = arith.mulf %185, %186 : vector<64x128xf32>
      %188 = arith.addf %181, %187 : vector<64x128xf32>
      %189 = vector.broadcast %7 : f32 to vector<64x128xf32>
      %190 = arith.addf %138, %189 : vector<64x128xf32>
      %cst_67 = arith.constant 0.000000e+00 : f32
      %191 = vector.broadcast %cst_67 : f32 to vector<64x128xf32>
      %192 = arith.maximumf %190, %191 : vector<64x128xf32>
      %193 = vector.broadcast %17 : f32 to vector<64x128xf32>
      %194 = arith.mulf %192, %193 : vector<64x128xf32>
      %195 = arith.addf %188, %194 : vector<64x128xf32>
      %196 = vector.broadcast %8 : f32 to vector<64x128xf32>
      %197 = arith.addf %138, %196 : vector<64x128xf32>
      %cst_68 = arith.constant 0.000000e+00 : f32
      %198 = vector.broadcast %cst_68 : f32 to vector<64x128xf32>
      %199 = arith.minimumf %197, %198 : vector<64x128xf32>
      %200 = vector.broadcast %18 : f32 to vector<64x128xf32>
      %201 = arith.mulf %199, %200 : vector<64x128xf32>
      %202 = arith.addf %195, %201 : vector<64x128xf32>
      %203 = vector.broadcast %9 : f32 to vector<64x128xf32>
      %204 = arith.addf %138, %203 : vector<64x128xf32>
      %cst_69 = arith.constant 0.000000e+00 : f32
      %205 = vector.broadcast %cst_69 : f32 to vector<64x128xf32>
      %206 = arith.maximumf %204, %205 : vector<64x128xf32>
      %207 = vector.broadcast %19 : f32 to vector<64x128xf32>
      %208 = arith.mulf %206, %207 : vector<64x128xf32>
      %209 = arith.addf %202, %208 : vector<64x128xf32>
      %c0_70 = arith.constant 0 : index
      %c0_71 = arith.constant 0 : index
      %210 = vector.load %arg11[%c0_70, %c0_71] : memref<64x128xf32, #tpu.memory_space<vmem>>, vector<64x128xf32>
      %211 = arith.mulf %209, %210 : vector<64x128xf32>
      %212 = arith.addf %211, %arg15 : vector<64x128xf32>
      scf.yield %212 : vector<64x128xf32>
    }
    %c0_32 = arith.constant 0 : index
    %c0_33 = arith.constant 0 : index
    %45 = vector.load %arg9[%c0_32, %c0_33] : memref<8x64xf32, #tpu.memory_space<vmem>>, vector<8x64xf32>
    %cst_34 = arith.constant dense<0.000000e+00> : vector<8x128xf32>
    %46 = tpu.matmul %45, %44, %cst_34 {dimension_numbers = #tpu.dot_dimension_numbers<[1], [0], [0], [1], [0, 0, 1, 1], [], []>} : vector<8x64xf32>, vector<64x128xf32>, vector<8x128xf32> -> vector<8x128xf32>
    %c0_35 = arith.constant 0 : index
    %c0_36 = arith.constant 0 : index
    %47 = vector.load %arg12[%c0_35, %c0_36] : memref<8x128xf32, #tpu.memory_space<vmem>>, vector<8x128xf32>
    %48 = arith.addf %46, %47 : vector<8x128xf32>
    %49 = vector.broadcast %41 : f32 to vector<8x128xf32>
    %50 = vector.broadcast %21 : f32 to vector<8x128xf32>
    %51 = arith.addf %48, %50 : vector<8x128xf32>
    %cst_37 = arith.constant 0.000000e+00 : f32
    %52 = vector.broadcast %cst_37 : f32 to vector<8x128xf32>
    %53 = arith.maximumf %51, %52 : vector<8x128xf32>
    %54 = vector.broadcast %31 : f32 to vector<8x128xf32>
    %55 = arith.mulf %53, %54 : vector<8x128xf32>
    %56 = arith.addf %49, %55 : vector<8x128xf32>
    %57 = vector.broadcast %22 : f32 to vector<8x128xf32>
    %58 = arith.addf %48, %57 : vector<8x128xf32>
    %cst_38 = arith.constant 0.000000e+00 : f32
    %59 = vector.broadcast %cst_38 : f32 to vector<8x128xf32>
    %60 = arith.maximumf %58, %59 : vector<8x128xf32>
    %61 = vector.broadcast %32 : f32 to vector<8x128xf32>
    %62 = arith.mulf %60, %61 : vector<8x128xf32>
    %63 = arith.addf %56, %62 : vector<8x128xf32>
    %64 = vector.broadcast %23 : f32 to vector<8x128xf32>
    %65 = arith.addf %48, %64 : vector<8x128xf32>
    %cst_39 = arith.constant 0.000000e+00 : f32
    %66 = vector.broadcast %cst_39 : f32 to vector<8x128xf32>
    %67 = arith.maximumf %65, %66 : vector<8x128xf32>
    %68 = vector.broadcast %33 : f32 to vector<8x128xf32>
    %69 = arith.mulf %67, %68 : vector<8x128xf32>
    %70 = arith.addf %63, %69 : vector<8x128xf32>
    %71 = vector.broadcast %24 : f32 to vector<8x128xf32>
    %72 = arith.addf %48, %71 : vector<8x128xf32>
    %cst_40 = arith.constant 0.000000e+00 : f32
    %73 = vector.broadcast %cst_40 : f32 to vector<8x128xf32>
    %74 = arith.maximumf %72, %73 : vector<8x128xf32>
    %75 = vector.broadcast %34 : f32 to vector<8x128xf32>
    %76 = arith.mulf %74, %75 : vector<8x128xf32>
    %77 = arith.addf %70, %76 : vector<8x128xf32>
    %78 = vector.broadcast %25 : f32 to vector<8x128xf32>
    %79 = arith.addf %48, %78 : vector<8x128xf32>
    %cst_41 = arith.constant 0.000000e+00 : f32
    %80 = vector.broadcast %cst_41 : f32 to vector<8x128xf32>
    %81 = arith.maximumf %79, %80 : vector<8x128xf32>
    %82 = vector.broadcast %35 : f32 to vector<8x128xf32>
    %83 = arith.mulf %81, %82 : vector<8x128xf32>
    %84 = arith.addf %77, %83 : vector<8x128xf32>
    %85 = vector.broadcast %26 : f32 to vector<8x128xf32>
    %86 = arith.addf %48, %85 : vector<8x128xf32>
    %cst_42 = arith.constant 0.000000e+00 : f32
    %87 = vector.broadcast %cst_42 : f32 to vector<8x128xf32>
    %88 = arith.maximumf %86, %87 : vector<8x128xf32>
    %89 = vector.broadcast %36 : f32 to vector<8x128xf32>
    %90 = arith.mulf %88, %89 : vector<8x128xf32>
    %91 = arith.addf %84, %90 : vector<8x128xf32>
    %92 = vector.broadcast %27 : f32 to vector<8x128xf32>
    %93 = arith.addf %48, %92 : vector<8x128xf32>
    %cst_43 = arith.constant 0.000000e+00 : f32
    %94 = vector.broadcast %cst_43 : f32 to vector<8x128xf32>
    %95 = arith.maximumf %93, %94 : vector<8x128xf32>
    %96 = vector.broadcast %37 : f32 to vector<8x128xf32>
    %97 = arith.mulf %95, %96 : vector<8x128xf32>
    %98 = arith.addf %91, %97 : vector<8x128xf32>
    %99 = vector.broadcast %28 : f32 to vector<8x128xf32>
    %100 = arith.addf %48, %99 : vector<8x128xf32>
    %cst_44 = arith.constant 0.000000e+00 : f32
    %101 = vector.broadcast %cst_44 : f32 to vector<8x128xf32>
    %102 = arith.minimumf %100, %101 : vector<8x128xf32>
    %103 = vector.broadcast %38 : f32 to vector<8x128xf32>
    %104 = arith.mulf %102, %103 : vector<8x128xf32>
    %105 = arith.addf %98, %104 : vector<8x128xf32>
    %106 = vector.broadcast %29 : f32 to vector<8x128xf32>
    %107 = arith.addf %48, %106 : vector<8x128xf32>
    %cst_45 = arith.constant 0.000000e+00 : f32
    %108 = vector.broadcast %cst_45 : f32 to vector<8x128xf32>
    %109 = arith.maximumf %107, %108 : vector<8x128xf32>
    %110 = vector.broadcast %39 : f32 to vector<8x128xf32>
    %111 = arith.mulf %109, %110 : vector<8x128xf32>
    %112 = arith.addf %105, %111 : vector<8x128xf32>
    %113 = vector.broadcast %30 : f32 to vector<8x128xf32>
    %114 = arith.addf %48, %113 : vector<8x128xf32>
    %cst_46 = arith.constant 0.000000e+00 : f32
    %115 = vector.broadcast %cst_46 : f32 to vector<8x128xf32>
    %116 = arith.maximumf %114, %115 : vector<8x128xf32>
    %117 = vector.broadcast %40 : f32 to vector<8x128xf32>
    %118 = arith.mulf %116, %117 : vector<8x128xf32>
    %119 = arith.addf %112, %118 : vector<8x128xf32>
    %120 = math.absf %119 : vector<8x128xf32>
    %cst_47 = arith.constant 0.000000e+00 : f32
    %121 = vector.broadcast %cst_47 : f32 to vector<8x128xf32>
    %122 = arith.subf %121, %120 : vector<8x128xf32>
    %123 = math.exp %122 : vector<8x128xf32>
    %cst_48 = arith.constant 1.000000e+00 : f32
    %124 = vector.broadcast %cst_48 : f32 to vector<8x128xf32>
    %125 = arith.addf %124, %123 : vector<8x128xf32>
    %126 = tpu.reciprocal %125 {approx = true} : vector<8x128xf32> -> vector<8x128xf32>
    %cst_49 = arith.constant 0.000000e+00 : f32
    %127 = vector.broadcast %cst_49 : f32 to vector<8x128xf32>
    %128 = arith.cmpf oge, %119, %127 : vector<8x128xf32>
    %129 = arith.mulf %123, %126 : vector<8x128xf32>
    %130 = arith.select %128, %129, %126 : vector<8x128xi1>, vector<8x128xf32>
    %c0_50 = arith.constant 0 : index
    %c0_51 = arith.constant 0 : index
    %131 = vector.load %arg13[%c0_50, %c0_51] : memref<8x128xf32, #tpu.memory_space<vmem>>, vector<8x128xf32>
    tpu.vector_store %arg13[%c0_50, %c0_51], %130 {strides = array<i32>} : memref<8x128xf32, #tpu.memory_space<vmem>>, vector<8x128xf32>,
    return
  }
  func.func @transform_0(%arg0: i32) -> i32 {
    %c0_i32 = arith.constant 0 : i32
    %c0_i32_0 = arith.constant 0 : i32
    return %c0_i32 : i32
  }
  func.func @transform_1(%arg0: i32) -> i32 {
    %c0_i32 = arith.constant 0 : i32
    %c0_i32_0 = arith.constant 0 : i32
    return %c0_i32 : i32
  }
  func.func @transform_2(%arg0: i32) -> i32 {
    %c0_i32 = arith.constant 0 : i32
    %c0_i32_0 = arith.constant 0 : i32
    return %c0_i32 : i32
  }
  func.func @transform_3(%arg0: i32) -> i32 {
    %c0_i32 = arith.constant 0 : i32
    %c0_i32_0 = arith.constant 0 : i32
    return %c0_i32 : i32
  }
  func.func @transform_4(%arg0: i32) -> i32 {
    %c0_i32 = arith.constant 0 : i32
    %c0_i32_0 = arith.constant 0 : i32
    return %c0_i32 : i32
  }
  func.func @transform_5(%arg0: i32) -> i32 {
    %c0_i32 = arith.constant 0 : i32
    %c0_i32_0 = arith.constant 0 : i32
    return %c0_i32 : i32
  }
  func.func @transform_6(%arg0: i32) -> (i32, i32) {
    %c0_i32 = arith.constant 0 : i32
    %c0_i32_0 = arith.constant 0 : i32
    %c0_i32_1 = arith.constant 0 : i32
    return %c0_i32, %c0_i32_0 : i32, i32
  }
  func.func @transform_7(%arg0: i32) -> (i32, i32) {
    %c0_i32 = arith.constant 0 : i32
    %c0_i32_0 = arith.constant 0 : i32
    %c0_i32_1 = arith.constant 0 : i32
    return %c0_i32, %c0_i32_0 : i32, i32
  }
  func.func @transform_8(%arg0: i32) -> (i32, i32) {
    %c0_i32 = arith.constant 0 : i32
    %c0_i32_0 = arith.constant 0 : i32
    %c0_i32_1 = arith.constant 0 : i32
    return %c0_i32, %c0_i32_0 : i32, i32
  }
  func.func @transform_9(%arg0: i32) -> (i32, i32) {
    %c0_i32 = arith.constant 0 : i32
    %c0_i32_0 = arith.constant 0 : i32
    return %c0_i32, %arg0 : i32, i32
  }
  func.func @transform_10(%arg0: i32) -> (i32, i32) {
    %c0_i32 = arith.constant 0 : i32
    %c0_i32_0 = arith.constant 0 : i32
    return %c0_i32, %arg0 : i32, i32
  }
  func.func @transform_11(%arg0: i32) -> (i32, i32) {
    %c0_i32 = arith.constant 0 : i32
    %c0_i32_0 = arith.constant 0 : i32
    return %c0_i32, %arg0 : i32, i32
  }
  func.func @transform_12(%arg0: i32) -> (i32, i32) {
    %c0_i32 = arith.constant 0 : i32
    %c0_i32_0 = arith.constant 0 : i32
    return %c0_i32, %arg0 : i32, i32
  }
}

</mosaic_0001>

<llo_original>
// kernel: gnni_apply.1
$region0: #{gnni_apply.1}
  #allocation0 [shape = 'u32[]', space=smem, size = 0x4, offset = 0x4, fixed_abs, tag = 'smem constant byte address 0x4 - core index']
  #allocation1 [shape = 'u32[72,128]{1,0:T(1,128)}', space=vmem, size = 0x9000, scoped, tag = 'internal scratch']
  #allocation2 [shape = 'f32[1]{0:T(128)S(6)}', space=smem, size = 0x200, scoped, tag = 'scoped memory for gnni_apply.1']
  #allocation3 [shape = 'f32[1]{0:T(128)S(6)}', space=smem, size = 0x200, scoped, tag = 'scoped memory for gnni_apply.1']
  %s0 = inlined_call_operand.vmem [shape: f32[10], index: 0, kind: input, shape index: {}]
  %s1 = inlined_call_operand.vmem [shape: f32[10], index: 1, kind: input, shape index: {}]
  %s2 = inlined_call_operand.<no memory space> [shape: f32[1], index: 2, kind: input, shape index: {}]
  %s3 = inlined_call_operand.vmem [shape: f32[10], index: 3, kind: input, shape index: {}]
  %s4 = inlined_call_operand.vmem [shape: f32[10], index: 4, kind: input, shape index: {}]
  %s5 = inlined_call_operand.<no memory space> [shape: f32[1], index: 5, kind: input, shape index: {}]
  %s6 = inlined_call_operand.vmem [shape: f32[64,64], index: 6, kind: input, shape index: {}]
  %s7 = inlined_call_operand.vmem [shape: f32[64,64], index: 7, kind: input, shape index: {}]
  %s8 = inlined_call_operand.vmem [shape: f32[8,64], index: 8, kind: input, shape index: {}]
  %s9 = inlined_call_operand.vmem [shape: f32[64,256], index: 9, kind: input, shape index: {}]
  %s10 = inlined_call_operand.vmem [shape: f32[64,256], index: 10, kind: input, shape index: {}]
  %s11 = inlined_call_operand.vmem [shape: f32[8,256], index: 11, kind: input, shape index: {}]
  %s12 = inlined_call_operand.vmem [shape: f32[8,256], index: 12, kind: output, shape index: {}]
  %s13 = sld [smem:[#allocation0]]
  $region180: #{gnni_apply.1} parent=0
    _
  %s15 = ssub.s32 1, %s13
  %s16 = scalar_select 0, %s15, %s13
  %17 = sst [smem:[#allocation2]] %s2
  %18 = sst [smem:[#allocation3]] %s5
  $region1: #{gnni_apply.1} parent=0
    #allocation4 [shape = 'u8[512]{0}', space=smem, size = 0x200, scoped, tag = 'input window, operand 0, single buffered']
    #allocation5 [shape = 's32[2]{0}', space=sflag, size = 0x8, scoped, tag = 'scoped memory for gnni_apply.1']
    #allocation6 [shape = 'u8[512]{0}', space=smem, size = 0x200, scoped, tag = 'input window, operand 1, single buffered']
    #allocation7 [shape = 's32[1]{0}', space=sflag, size = 0x4, scoped, tag = 'scoped memory for gnni_apply.1']
    #allocation8 [shape = 'u8[512]{0}', space=smem, size = 0x200, scoped, tag = 'input window, operand 3, single buffered']
    #allocation9 [shape = 'u8[512]{0}', space=smem, size = 0x200, scoped, tag = 'input window, operand 4, single buffered']
    #allocation10 [shape = 's32[1]{0}', space=sflag, size = 0x4, scoped, tag = 'scoped memory for gnni_apply.1']
    #allocation11 [shape = 'u8[65536]{0}', space=vmem, size = 0x10000, scoped, tag = 'input window, operand 9']
    #allocation12 [shape = 'u8[65536]{0}', space=vmem, size = 0x10000, scoped, tag = 'input window, operand 10']
    %19 = vsyncpa [#allocation5], 0
    %20 = vsyncpa [#allocation7], 0
    %21 = vsyncpa [#allocation10], 0
    loop: start=0, step=1, limit=4
    $region2: #{gnni_apply.1} parent=1 // loop_pre_header
      _
    $region3: #{gnni_apply.1} parent=1 // loop_header
      %s23 = sphi 0, %s27
      %p24 = scmp.ge.s32.totalorder %s23, 4
      %s31 = sphi 0, %s31
      %s33 = sphi 0, %s31
      %s34 = sphi 0, %s33
      %s48 = sphi 0, %s34
      %s52 = sphi 0, %s52
      %s54 = sphi 0, %s52
      %s55 = sphi 0, %s54
      %s69 = sphi 0, %s55
      %s73 = sphi 0, %s73
      %s75 = sphi 0, %s73
      %s76 = sphi 0, %s75
      %s90 = sphi 0, %s76
      %s94 = sphi 0, %s94
      %s96 = sphi 0, %s94
      %s97 = sphi 0, %s96
      %s111 = sphi 0, %s97
      %s115 = sphi 0, %s115
      %s117 = sphi 0, %s115
      %s118 = sphi 0, %s117
      %s132 = sphi 0, %s118
      %s136 = sphi 0, %s136
      %s138 = sphi 0, %s136
      %s139 = sphi 0, %s138
      %s153 = sphi 0, %s139
      %s157 = sphi 0, %s157
      %s159 = sphi 0, %s157
      %s160 = sphi 0, %s159
      %s174 = sphi 0, %s160
      %s178 = sphi 0, %s178
      %s180 = sphi 0, %s178
      %s181 = sphi 0, %s180
      %s195 = sphi 0, %s181
      %s199 = sphi 0, %s199
      %s201 = sphi 0, %s199
      %s202 = sphi 0, %s201
      %s216 = sphi 0, %s202
      %s222 = sphi 0, %s224
      %s225 = sphi 0, %s222
      %s226 = sphi 0, %s225
      %s242 = sphi 0, %s226
      %s248 = sphi 0, %s250
      %s251 = sphi 0, %s248
      %s252 = sphi 0, %s251
      %s268 = sphi 0, %s252
      %s274 = sphi 0, %s276
      %s277 = sphi 0, %s274
      %s278 = sphi 0, %s277
      %s294 = sphi 0, %s278
      %s300 = sphi 0, %s302
      %s303 = sphi 0, %s300
      %s304 = sphi 0, %s303
      %s320 = sphi 0, %s304
    $region4: #{gnni_apply.1} parent=1 // loop_header_branch
      %26 = sbr.rel (%p24) target = $region8
    $region5: #{gnni_apply.1} parent=1 // loop_body
      %s28 = ssub.s32 %s23, 1
      %s29 = ssub.s32 %s23, 2
      %s30 = sadd.s32 %s23, 1
      %s32 = sadd.s32 %s31, 1
      %p35 = scmp.eq.s32.totalorder %s23, 1
      %p36 = scmp.ne.s32.totalorder %s31, %s33
      %p37 = scmp.eq.s32.totalorder %s23, 0
      %p38 = por %p36, %p37
      %p39 = scmp.ne.s32.totalorder %s31, %s33
      %p40 = scmp.eq.s32.totalorder %s28, 1
      %p41 = por %p39, %p40
      %p42 = scmp.ne.s32.totalorder %s33, %s34
      %p43 = scmp.eq.s32.totalorder %s28, 0
      %p44 = por %p42, %p43
      %p45 = scmp.ne.s32.totalorder %s33, %s34
      %p46 = scmp.eq.s32.totalorder %s29, 1
      %p47 = por %p45, %p46
      %p49 = scmp.ne.s32.totalorder %s34, %s48
      %p50 = scmp.eq.s32.totalorder %s29, 0
      %p51 = por %p49, %p50
      %s53 = sadd.s32 %s52, 1
      %p56 = scmp.eq.s32.totalorder %s23, 1
      %p57 = scmp.ne.s32.totalorder %s52, %s54
      %p58 = scmp.eq.s32.totalorder %s23, 0
      %p59 = por %p57, %p58
      %p60 = scmp.ne.s32.totalorder %s52, %s54
      %p61 = scmp.eq.s32.totalorder %s28, 1
      %p62 = por %p60, %p61
      %p63 = scmp.ne.s32.totalorder %s54, %s55
      %p64 = scmp.eq.s32.totalorder %s28, 0
      %p65 = por %p63, %p64
      %p66 = scmp.ne.s32.totalorder %s54, %s55
      %p67 = scmp.eq.s32.totalorder %s29, 1
      %p68 = por %p66, %p67
      %p70 = scmp.ne.s32.totalorder %s55, %s69
      %p71 = scmp.eq.s32.totalorder %s29, 0
      %p72 = por %p70, %p71
      %s74 = sadd.s32 %s73, 1
      %p77 = scmp.eq.s32.totalorder %s23, 1
      %p78 = scmp.ne.s32.totalorder %s73, %s75
      %p79 = scmp.eq.s32.totalorder %s23, 0
      %p80 = por %p78, %p79
      %p81 = scmp.ne.s32.totalorder %s73, %s75
      %p82 = scmp.eq.s32.totalorder %s28, 1
      %p83 = por %p81, %p82
      %p84 = scmp.ne.s32.totalorder %s75, %s76
      %p85 = scmp.eq.s32.totalorder %s28, 0
      %p86 = por %p84, %p85
      %p87 = scmp.ne.s32.totalorder %s75, %s76
      %p88 = scmp.eq.s32.totalorder %s29, 1
      %p89 = por %p87, %p88
      %p91 = scmp.ne.s32.totalorder %s76, %s90
      %p92 = scmp.eq.s32.totalorder %s29, 0
      %p93 = por %p91, %p92
      %s95 = sadd.s32 %s94, 1
      %p98 = scmp.eq.s32.totalorder %s23, 1
      %p99 = scmp.ne.s32.totalorder %s94, %s96
      %p100 = scmp.eq.s32.totalorder %s23, 0
      %p101 = por %p99, %p100
      %p102 = scmp.ne.s32.totalorder %s94, %s96
      %p103 = scmp.eq.s32.totalorder %s28, 1
      %p104 = por %p102, %p103
      %p105 = scmp.ne.s32.totalorder %s96, %s97
      %p106 = scmp.eq.s32.totalorder %s28, 0
      %p107 = por %p105, %p106
      %p108 = scmp.ne.s32.totalorder %s96, %s97
      %p109 = scmp.eq.s32.totalorder %s29, 1
      %p110 = por %p108, %p109
      %p112 = scmp.ne.s32.totalorder %s97, %s111
      %p113 = scmp.eq.s32.totalorder %s29, 0
      %p114 = por %p112, %p113
      %s116 = sadd.s32 %s115, 1
      %p119 = scmp.eq.s32.totalorder %s23, 1
      %p120 = scmp.ne.s32.totalorder %s115, %s117
      %p121 = scmp.eq.s32.totalorder %s23, 0
      %p122 = por %p120, %p121
      %p123 = scmp.ne.s32.totalorder %s115, %s117
      %p124 = scmp.eq.s32.totalorder %s28, 1
      %p125 = por %p123, %p124
      %p126 = scmp.ne.s32.totalorder %s117, %s118
      %p127 = scmp.eq.s32.totalorder %s28, 0
      %p128 = por %p126, %p127
      %p129 = scmp.ne.s32.totalorder %s117, %s118
      %p130 = scmp.eq.s32.totalorder %s29, 1
      %p131 = por %p129, %p130
      %p133 = scmp.ne.s32.totalorder %s118, %s132
      %p134 = scmp.eq.s32.totalorder %s29, 0
      %p135 = por %p133, %p134
      %s137 = sadd.s32 %s136, 1
      %p140 = scmp.eq.s32.totalorder %s23, 1
      %p141 = scmp.ne.s32.totalorder %s136, %s138
      %p142 = scmp.eq.s32.totalorder %s23, 0
      %p143 = por %p141, %p142
      %p144 = scmp.ne.s32.totalorder %s136, %s138
      %p145 = scmp.eq.s32.totalorder %s28, 1
      %p146 = por %p144, %p145
      %p147 = scmp.ne.s32.totalorder %s138, %s139
      %p148 = scmp.eq.s32.totalorder %s28, 0
      %p149 = por %p147, %p148
      %p150 = scmp.ne.s32.totalorder %s138, %s139
      %p151 = scmp.eq.s32.totalorder %s29, 1
      %p152 = por %p150, %p151
      %p154 = scmp.ne.s32.totalorder %s139, %s153
      %p155 = scmp.eq.s32.totalorder %s29, 0
      %p156 = por %p154, %p155
      %s158 = sadd.s32 %s157, 1
      %p161 = scmp.eq.s32.totalorder %s23, 1
      %p162 = scmp.ne.s32.totalorder %s157, %s159
      %p163 = scmp.eq.s32.totalorder %s23, 0
      %p164 = por %p162, %p163
      %p165 = scmp.ne.s32.totalorder %s157, %s159
      %p166 = scmp.eq.s32.totalorder %s28, 1
      %p167 = por %p165, %p166
      %p168 = scmp.ne.s32.totalorder %s159, %s160
      %p169 = scmp.eq.s32.totalorder %s28, 0
      %p170 = por %p168, %p169
      %p171 = scmp.ne.s32.totalorder %s159, %s160
      %p172 = scmp.eq.s32.totalorder %s29, 1
      %p173 = por %p171, %p172
      %p175 = scmp.ne.s32.totalorder %s160, %s174
      %p176 = scmp.eq.s32.totalorder %s29, 0
      %p177 = por %p175, %p176
      %s179 = sadd.s32 %s178, 1
      %p182 = scmp.eq.s32.totalorder %s23, 1
      %p183 = scmp.ne.s32.totalorder %s178, %s180
      %p184 = scmp.eq.s32.totalorder %s23, 0
      %p185 = por %p183, %p184
      %p186 = scmp.ne.s32.totalorder %s178, %s180
      %p187 = scmp.eq.s32.totalorder %s28, 1
      %p188 = por %p186, %p187
      %p189 = scmp.ne.s32.totalorder %s180, %s181
      %p190 = scmp.eq.s32.totalorder %s28, 0
      %p191 = por %p189, %p190
      %p192 = scmp.ne.s32.totalorder %s180, %s181
      %p193 = scmp.eq.s32.totalorder %s29, 1
      %p194 = por %p192, %p193
      %p196 = scmp.ne.s32.totalorder %s181, %s195
      %p197 = scmp.eq.s32.totalorder %s29, 0
      %p198 = por %p196, %p197
      %s200 = sadd.s32 %s199, 1
      %p203 = scmp.eq.s32.totalorder %s23, 1
      %p204 = scmp.ne.s32.totalorder %s199, %s201
      %p205 = scmp.eq.s32.totalorder %s23, 0
      %p206 = por %p204, %p205
      %p207 = scmp.ne.s32.totalorder %s199, %s201
      %p208 = scmp.eq.s32.totalorder %s28, 1
      %p209 = por %p207, %p208
      %p210 = scmp.ne.s32.totalorder %s201, %s202
      %p211 = scmp.eq.s32.totalorder %s28, 0
      %p212 = por %p210, %p211
      %p213 = scmp.ne.s32.totalorder %s201, %s202
      %p214 = scmp.eq.s32.totalorder %s29, 1
      %p215 = por %p213, %p214
      %p217 = scmp.ne.s32.totalorder %s202, %s216
      %p218 = scmp.eq.s32.totalorder %s29, 0
      %p219 = por %p217, %p218
      %s220 = ssub.s32 %s23, %s30
      %p221 = scmp.eq.s32.totalorder %s220, 0
      %s223 = sadd.s32 %s222, 1
      %s224 = scalar_select %p221, %s222, %s223
      %p227 = pneg %p221
      %p228 = scmp.eq.s32.totalorder %s23, 1
      %p229 = por %p227, %p228
      %p230 = scmp.ne.s32.totalorder %s222, %s225
      %p231 = scmp.eq.s32.totalorder %s23, 0
      %p232 = por %p230, %p231
      %p233 = scmp.ne.s32.totalorder %s222, %s225
      %p234 = scmp.eq.s32.totalorder %s28, 1
      %p235 = por %p233, %p234
      %p236 = scmp.ne.s32.totalorder %s225, %s226
      %p237 = scmp.eq.s32.totalorder %s28, 0
      %p238 = por %p236, %p237
      %p239 = scmp.ne.s32.totalorder %s225, %s226
      %p240 = scmp.eq.s32.totalorder %s29, 1
      %p241 = por %p239, %p240
      %p243 = scmp.ne.s32.totalorder %s226, %s242
      %p244 = scmp.eq.s32.totalorder %s29, 0
      %p245 = por %p243, %p244
      %s246 = ssub.s32 %s23, %s30
      %p247 = scmp.eq.s32.totalorder %s246, 0
      %s249 = sadd.s32 %s248, 1
      %s250 = scalar_select %p247, %s248, %s249
      %p253 = pneg %p247
      %p254 = scmp.eq.s32.totalorder %s23, 1
      %p255 = por %p253, %p254
      %p256 = scmp.ne.s32.totalorder %s248, %s251
      %p257 = scmp.eq.s32.totalorder %s23, 0
      %p258 = por %p256, %p257
      %p259 = scmp.ne.s32.totalorder %s248, %s251
      %p260 = scmp.eq.s32.totalorder %s28, 1
      %p261 = por %p259, %p260
      %p262 = scmp.ne.s32.totalorder %s251, %s252
      %p263 = scmp.eq.s32.totalorder %s28, 0
      %p264 = por %p262, %p263
      %p265 = scmp.ne.s32.totalorder %s251, %s252
      %p266 = scmp.eq.s32.totalorder %s29, 1
      %p267 = por %p265, %p266
      %p269 = scmp.ne.s32.totalorder %s252, %s268
      %p270 = scmp.eq.s32.totalorder %s29, 0
      %p271 = por %p269, %p270
      %s272 = ssub.s32 %s23, %s30
      %p273 = scmp.eq.s32.totalorder %s272, 0
      %s275 = sadd.s32 %s274, 1
      %s276 = scalar_select %p273, %s274, %s275
      %p279 = pneg %p273
      %p280 = scmp.eq.s32.totalorder %s23, 1
      %p281 = por %p279, %p280
      %p282 = scmp.ne.s32.totalorder %s274, %s277
      %p283 = scmp.eq.s32.totalorder %s23, 0
      %p284 = por %p282, %p283
      %p285 = scmp.ne.s32.totalorder %s274, %s277
      %p286 = scmp.eq.s32.totalorder %s28, 1
      %p287 = por %p285, %p286
      %p288 = scmp.ne.s32.totalorder %s277, %s278
      %p289 = scmp.eq.s32.totalorder %s28, 0
      %p290 = por %p288, %p289
      %p291 = scmp.ne.s32.totalorder %s277, %s278
      %p292 = scmp.eq.s32.totalorder %s29, 1
      %p293 = por %p291, %p292
      %p295 = scmp.ne.s32.totalorder %s278, %s294
      %p296 = scmp.eq.s32.totalorder %s29, 0
      %p297 = por %p295, %p296
      %s298 = ssub.s32 %s23, %s30
      %p299 = scmp.eq.s32.totalorder %s298, 0
      %s301 = sadd.s32 %s300, 1
      %s302 = scalar_select %p299, %s300, %s301
      %p305 = pneg %p299
      %p306 = scmp.eq.s32.totalorder %s23, 1
      %p307 = por %p305, %p306
      %p308 = scmp.ne.s32.totalorder %s300, %s303
      %p309 = scmp.eq.s32.totalorder %s23, 0
      %p310 = por %p308, %p309
      %p311 = scmp.ne.s32.totalorder %s300, %s303
      %p312 = scmp.eq.s32.totalorder %s28, 1
      %p313 = por %p311, %p312
      %p314 = scmp.ne.s32.totalorder %s303, %s304
      %p315 = scmp.eq.s32.totalorder %s28, 0
      %p316 = por %p314, %p315
      %p317 = scmp.ne.s32.totalorder %s303, %s304
      %p318 = scmp.eq.s32.totalorder %s29, 1
      %p319 = por %p317, %p318
      %p321 = scmp.ne.s32.totalorder %s304, %s320
      %p322 = scmp.eq.s32.totalorder %s29, 0
      %p323 = por %p321, %p322
      %p324 = scmp.le.s32.totalorder 1, %s23
      %p325 = scmp.lt.s32.totalorder %s23, 3
      %p326 = pnand %p324, %p325
      %p327 = pneg %p326
      // Predicated region
      $region9: #{gnni_apply.1} parent=5 // pred_check
        _
      $region10: #{gnni_apply.1} parent=5 // pred_check_branch
        %329 = sbr.rel (%p326) target = $region12
      $region11: #{gnni_apply.1} parent=5 // pred_region
        %s330 = ssub.s32 %s23, 1
        // Predicated region
        $region13: #{gnni_apply.1} parent=11 // pred_check
          %p331 = pneg %p44
        $region14: #{gnni_apply.1} parent=11 // pred_check_branch
          %333 = sbr.rel (%p331) target = $region16
        $region15: #{gnni_apply.1} parent=11 // pred_region
          %335 = vsyncadd [#allocation5], 0
          %s337 = sshll.u32 %s0, 4
          %s338 = int_to_ptr.vmem [resolvable:$true] %s337
          %340 = dma.vmem_to_smem %s338, 16, [#allocation4], [#allocation5]
        $region16: #{gnni_apply.1} parent=11 // pred_fallthru
          _
        // Predicated region
        $region17: #{gnni_apply.1} parent=11 // pred_check
          %p341 = pneg %p65
        $region18: #{gnni_apply.1} parent=11 // pred_check_branch
          %343 = sbr.rel (%p341) target = $region20
        $region19: #{gnni_apply.1} parent=11 // pred_region
          %345 = vsyncadd [#allocation7], 0
          %s347 = sshll.u32 %s1, 4
          %s348 = int_to_ptr.vmem [resolvable:$true] %s347
          %350 = dma.vmem_to_smem %s348, 16, [#allocation6], [#allocation7]
        $region20: #{gnni_apply.1} parent=11 // pred_fallthru
          _
        // Predicated region
        $region21: #{gnni_apply.1} parent=11 // pred_check
          %p351 = pneg %p86
        $region22: #{gnni_apply.1} parent=11 // pred_check_branch
          %353 = sbr.rel (%p351) target = $region24
        $region23: #{gnni_apply.1} parent=11 // pred_region
          _
        $region24: #{gnni_apply.1} parent=11 // pred_fallthru
          _
        // Predicated region
        $region25: #{gnni_apply.1} parent=11 // pred_check
          %p354 = pneg %p107
        $region26: #{gnni_apply.1} parent=11 // pred_check_branch
          %356 = sbr.rel (%p354) target = $region28
        $region27: #{gnni_apply.1} parent=11 // pred_region
          %358 = vsyncadd [#allocation7], 0
          %s360 = sshll.u32 %s3, 4
          %s361 = int_to_ptr.vmem [resolvable:$true] %s360
          %363 = dma.vmem_to_smem %s361, 16, [#allocation8], [#allocation7]
        $region28: #{gnni_apply.1} parent=11 // pred_fallthru
          _
        // Predicated region
        $region29: #{gnni_apply.1} parent=11 // pred_check
          %p364 = pneg %p128
        $region30: #{gnni_apply.1} parent=11 // pred_check_branch
          %366 = sbr.rel (%p364) target = $region32
        $region31: #{gnni_apply.1} parent=11 // pred_region
          %368 = vsyncadd [#allocation10], 0
          %s370 = sshll.u32 %s4, 4
          %s371 = int_to_ptr.vmem [resolvable:$true] %s370
          %373 = dma.vmem_to_smem %s371, 16, [#allocation9], [#allocation10]
        $region32: #{gnni_apply.1} parent=11 // pred_fallthru
          _
        // Predicated region
        $region33: #{gnni_apply.1} parent=11 // pred_check
          %p374 = pneg %p149
        $region34: #{gnni_apply.1} parent=11 // pred_check_branch
          %376 = sbr.rel (%p374) target = $region36
        $region35: #{gnni_apply.1} parent=11 // pred_region
          _
        $region36: #{gnni_apply.1} parent=11 // pred_fallthru
          _
        // Predicated region
        $region37: #{gnni_apply.1} parent=11 // pred_check
          %p377 = pneg %p170
        $region38: #{gnni_apply.1} parent=11 // pred_check_branch
          %379 = sbr.rel (%p377) target = $region40
        $region39: #{gnni_apply.1} parent=11 // pred_region
          _
        $region40: #{gnni_apply.1} parent=11 // pred_fallthru
          _
        // Predicated region
        $region41: #{gnni_apply.1} parent=11 // pred_check
          %p380 = pneg %p191
        $region42: #{gnni_apply.1} parent=11 // pred_check_branch
          %382 = sbr.rel (%p380) target = $region44
        $region43: #{gnni_apply.1} parent=11 // pred_region
          _
        $region44: #{gnni_apply.1} parent=11 // pred_fallthru
          _
        // Predicated region
        $region45: #{gnni_apply.1} parent=11 // pred_check
          %p383 = pneg %p212
        $region46: #{gnni_apply.1} parent=11 // pred_check_branch
          %385 = sbr.rel (%p383) target = $region48
        $region47: #{gnni_apply.1} parent=11 // pred_region
          _
        $region48: #{gnni_apply.1} parent=11 // pred_fallthru
          _
      $region12: #{gnni_apply.1} parent=5 // pred_fallthru
        _
      %p386 = scmp.lt.s32.totalorder %s23, 2
      // Predicated region
      $region49: #{gnni_apply.1} parent=5 // pred_check
        %p387 = pneg %p386
      $region50: #{gnni_apply.1} parent=5 // pred_check_branch
        %389 = sbr.rel (%p387) target = $region52
      $region51: #{gnni_apply.1} parent=5 // pred_region
        // Predicated region
        $region53: #{gnni_apply.1} parent=51 // pred_check
          %p390 = pneg %p232
        $region54: #{gnni_apply.1} parent=51 // pred_check_branch
          %392 = sbr.rel (%p390) target = $region56
        $region55: #{gnni_apply.1} parent=51 // pred_region
          %s393 = sand.u32 %s222, 1
          %s394 = sand.u32 %s222, 1
          %s395 = smul.addr %s394, 64
          %s396 = scalar_lea.vmem [#allocation11], %s395
          %s397 = smul.addr %s23, 8
          %s398 = scalar_lea.vmem %s9, %s397
          // Predicated region
          $region57: #{gnni_apply.1} parent=55 // pred_check
            _
          $region58: #{gnni_apply.1} parent=55 // pred_check_branch
            %400 = sbr.rel (0) target = $region60
          $region59: #{gnni_apply.1} parent=55 // pred_region
            // Predicated region
            $region61: #{gnni_apply.1} parent=59 // pred_check
              _
            $region62: #{gnni_apply.1} parent=59 // pred_check_branch
              %402 = sbr.rel (0) target = $region64
            $region63: #{gnni_apply.1} parent=59 // pred_region
              // Predicated region
              $region76: #{gnni_apply.1} parent=63 // pred_check
                _
              $region77: #{gnni_apply.1} parent=63 // pred_check_branch
                %432 = sbr.rel (0) target = $region79
              $region78: #{gnni_apply.1} parent=63 // pred_region
                loop: start=0, step=1, limit=1
                $region80: #{gnni_apply.1} parent=78 // loop_pre_header
                  _
                $region81: #{gnni_apply.1} parent=78 // loop_header
                  %s434 = sphi 0, %s438
                  %p435 = scmp.ge.s32.totalorder %s434, 1
                  %s439 = sphi %s398, %s398
                  %s440 = sphi %s396, %s396
                $region82: #{gnni_apply.1} parent=78 // loop_header_branch
                  %437 = sbr.rel (%p435) target = $region86
                $region83: #{gnni_apply.1} parent=78 // loop_body
                  %v441 = vld [vmem:[%s439] sm:$0xff]
                  %442 = vst [vmem:[%s440] sm:$0xff] %v441
                  %v443 = vld [vmem:[%s439 + $0x10] sm:$0xff]
                  %444 = vst [vmem:[%s440 + $0x8] sm:$0xff] %v443
                  %v445 = vld [vmem:[%s439 + $0x20] sm:$0xff]
                  %446 = vst [vmem:[%s440 + $0x10] sm:$0xff] %v445
                  %v447 = vld [vmem:[%s439 + $0x30] sm:$0xff]
                  %448 = vst [vmem:[%s440 + $0x18] sm:$0xff] %v447
                  %v449 = vld [vmem:[%s439 + $0x40] sm:$0xff]
                  %450 = vst [vmem:[%s440 + $0x20] sm:$0xff] %v449
                  %v451 = vld [vmem:[%s439 + $0x50] sm:$0xff]
                  %452 = vst [vmem:[%s440 + $0x28] sm:$0xff] %v451
                  %v453 = vld [vmem:[%s439 + $0x60] sm:$0xff]
                  %454 = vst [vmem:[%s440 + $0x30] sm:$0xff] %v453
                  %v455 = vld [vmem:[%s439 + $0x70] sm:$0xff]
                  %456 = vst [vmem:[%s440 + $0x38] sm:$0xff] %v455
                $region84: #{gnni_apply.1} parent=78 // loop_footer
                  %s438 = sadd.s32 1, %s434
                $region85: #{gnni_apply.1} parent=78 // loop_footer_branch
                  %433 = sbr.rel target = $region81
                $region86: #{gnni_apply.1} parent=78 // loop_exit
                  _
              $region79: #{gnni_apply.1} parent=63 // pred_fallthru
                _
              // Predicated region
              $region87: #{gnni_apply.1} parent=63 // pred_check
                _
              $region88: #{gnni_apply.1} parent=63 // pred_check_branch
                %458 = sbr.rel target = $region90
              $region89: #{gnni_apply.1} parent=63 // pred_region
                _
              $region90: #{gnni_apply.1} parent=63 // pred_fallthru
                _
            $region64: #{gnni_apply.1} parent=59 // pred_fallthru
              _
            // Predicated region
            $region65: #{gnni_apply.1} parent=59 // pred_check
              _
            $region66: #{gnni_apply.1} parent=59 // pred_check_branch
              %404 = sbr.rel target = $region68
            $region67: #{gnni_apply.1} parent=59 // pred_region
              %s406 = ssub.s32 256, 1
              loop: start=0, step=1, limit=1
              $region69: #{gnni_apply.1} parent=67 // loop_pre_header
                _
              $region70: #{gnni_apply.1} parent=67 // loop_header
                %s408 = sphi 0, %s412
                %p409 = scmp.ge.s32.totalorder %s408, 1
                %s413 = sphi %s398, %s398
                %s414 = sphi %s396, %s396
              $region71: #{gnni_apply.1} parent=67 // loop_header_branch
                %411 = sbr.rel (%p409) target = $region75
              $region72: #{gnni_apply.1} parent=67 // loop_body
                %v415 = vld [vmem:[%s413] sm:%s406]
                %416 = vst [vmem:[%s414] sm:%s406] %v415
                %v417 = vld [vmem:[%s413 + $0x10] sm:%s406]
                %418 = vst [vmem:[%s414 + $0x8] sm:%s406] %v417
                %v419 = vld [vmem:[%s413 + $0x20] sm:%s406]
                %420 = vst [vmem:[%s414 + $0x10] sm:%s406] %v419
                %v421 = vld [vmem:[%s413 + $0x30] sm:%s406]
                %422 = vst [vmem:[%s414 + $0x18] sm:%s406] %v421
                %v423 = vld [vmem:[%s413 + $0x40] sm:%s406]
                %424 = vst [vmem:[%s414 + $0x20] sm:%s406] %v423
                %v425 = vld [vmem:[%s413 + $0x50] sm:%s406]
                %426 = vst [vmem:[%s414 + $0x28] sm:%s406] %v425
                %v427 = vld [vmem:[%s413 + $0x60] sm:%s406]
                %428 = vst [vmem:[%s414 + $0x30] sm:%s406] %v427
                %v429 = vld [vmem:[%s413 + $0x70] sm:%s406]
                %430 = vst [vmem:[%s414 + $0x38] sm:%s406] %v429
              $region73: #{gnni_apply.1} parent=67 // loop_footer
                %s412 = sadd.s32 1, %s408
              $region74: #{gnni_apply.1} parent=67 // loop_footer_branch
                %407 = sbr.rel target = $region70
              $region75: #{gnni_apply.1} parent=67 // loop_exit
                _
            $region68: #{gnni_apply.1} parent=59 // pred_fallthru
              _
          $region60: #{gnni_apply.1} parent=55 // pred_fallthru
            _
          %459 = vnop
        $region56: #{gnni_apply.1} parent=51 // pred_fallthru
          _
        // Predicated region
        $region91: #{gnni_apply.1} parent=51 // pred_check
          %p460 = pneg %p258
        $region92: #{gnni_apply.1} parent=51 // pred_check_branch
          %462 = sbr.rel (%p460) target = $region94
        $region93: #{gnni_apply.1} parent=51 // pred_region
          %s463 = sand.u32 %s248, 1
          %s464 = sand.u32 %s248, 1
          %s465 = smul.addr %s464, 64
          %s466 = scalar_lea.vmem [#allocation12], %s465
          %s467 = smul.addr %s23, 8
          %s468 = scalar_lea.vmem %s10, %s467
          // Predicated region
          $region95: #{gnni_apply.1} parent=93 // pred_check
            _
          $region96: #{gnni_apply.1} parent=93 // pred_check_branch
            %470 = sbr.rel (0) target = $region98
          $region97: #{gnni_apply.1} parent=93 // pred_region
            // Predicated region
            $region99: #{gnni_apply.1} parent=97 // pred_check
              _
            $region100: #{gnni_apply.1} parent=97 // pred_check_branch
              %472 = sbr.rel (0) target = $region102
            $region101: #{gnni_apply.1} parent=97 // pred_region
              // Predicated region
              $region114: #{gnni_apply.1} parent=101 // pred_check
                _
              $region115: #{gnni_apply.1} parent=101 // pred_check_branch
                %502 = sbr.rel (0) target = $region117
              $region116: #{gnni_apply.1} parent=101 // pred_region
                loop: start=0, step=1, limit=1
                $region118: #{gnni_apply.1} parent=116 // loop_pre_header
                  _
                $region119: #{gnni_apply.1} parent=116 // loop_header
                  %s504 = sphi 0, %s508
                  %p505 = scmp.ge.s32.totalorder %s504, 1
                  %s509 = sphi %s468, %s468
                  %s510 = sphi %s466, %s466
                $region120: #{gnni_apply.1} parent=116 // loop_header_branch
                  %507 = sbr.rel (%p505) target = $region124
                $region121: #{gnni_apply.1} parent=116 // loop_body
                  %v511 = vld [vmem:[%s509] sm:$0xff]
                  %512 = vst [vmem:[%s510] sm:$0xff] %v511
                  %v513 = vld [vmem:[%s509 + $0x10] sm:$0xff]
                  %514 = vst [vmem:[%s510 + $0x8] sm:$0xff] %v513
                  %v515 = vld [vmem:[%s509 + $0x20] sm:$0xff]
                  %516 = vst [vmem:[%s510 + $0x10] sm:$0xff] %v515
                  %v517 = vld [vmem:[%s509 + $0x30] sm:$0xff]
                  %518 = vst [vmem:[%s510 + $0x18] sm:$0xff] %v517
                  %v519 = vld [vmem:[%s509 + $0x40] sm:$0xff]
                  %520 = vst [vmem:[%s510 + $0x20] sm:$0xff] %v519
                  %v521 = vld [vmem:[%s509 + $0x50] sm:$0xff]
                  %522 = vst [vmem:[%s510 + $0x28] sm:$0xff] %v521
                  %v523 = vld [vmem:[%s509 + $0x60] sm:$0xff]
                  %524 = vst [vmem:[%s510 + $0x30] sm:$0xff] %v523
                  %v525 = vld [vmem:[%s509 + $0x70] sm:$0xff]
                  %526 = vst [vmem:[%s510 + $0x38] sm:$0xff] %v525
                $region122: #{gnni_apply.1} parent=116 // loop_footer
                  %s508 = sadd.s32 1, %s504
                $region123: #{gnni_apply.1} parent=116 // loop_footer_branch
                  %503 = sbr.rel target = $region119
                $region124: #{gnni_apply.1} parent=116 // loop_exit
                  _
              $region117: #{gnni_apply.1} parent=101 // pred_fallthru
                _
              // Predicated region
              $region125: #{gnni_apply.1} parent=101 // pred_check
                _
              $region126: #{gnni_apply.1} parent=101 // pred_check_branch
                %528 = sbr.rel target = $region128
              $region127: #{gnni_apply.1} parent=101 // pred_region
                _
              $region128: #{gnni_apply.1} parent=101 // pred_fallthru
                _
            $region102: #{gnni_apply.1} parent=97 // pred_fallthru
              _
            // Predicated region
            $region103: #{gnni_apply.1} parent=97 // pred_check
              _
            $region104: #{gnni_apply.1} parent=97 // pred_check_branch
              %474 = sbr.rel target = $region106
            $region105: #{gnni_apply.1} parent=97 // pred_region
              %s476 = ssub.s32 256, 1
              loop: start=0, step=1, limit=1
              $region107: #{gnni_apply.1} parent=105 // loop_pre_header
                _
              $region108: #{gnni_apply.1} parent=105 // loop_header
                %s478 = sphi 0, %s482
                %p479 = scmp.ge.s32.totalorder %s478, 1
                %s483 = sphi %s468, %s468
                %s484 = sphi %s466, %s466
              $region109: #{gnni_apply.1} parent=105 // loop_header_branch
                %481 = sbr.rel (%p479) target = $region113
              $region110: #{gnni_apply.1} parent=105 // loop_body
                %v485 = vld [vmem:[%s483] sm:%s476]
                %486 = vst [vmem:[%s484] sm:%s476] %v485
                %v487 = vld [vmem:[%s483 + $0x10] sm:%s476]
                %488 = vst [vmem:[%s484 + $0x8] sm:%s476] %v487
                %v489 = vld [vmem:[%s483 + $0x20] sm:%s476]
                %490 = vst [vmem:[%s484 + $0x10] sm:%s476] %v489
                %v491 = vld [vmem:[%s483 + $0x30] sm:%s476]
                %492 = vst [vmem:[%s484 + $0x18] sm:%s476] %v491
                %v493 = vld [vmem:[%s483 + $0x40] sm:%s476]
                %494 = vst [vmem:[%s484 + $0x20] sm:%s476] %v493
                %v495 = vld [vmem:[%s483 + $0x50] sm:%s476]
                %496 = vst [vmem:[%s484 + $0x28] sm:%s476] %v495
                %v497 = vld [vmem:[%s483 + $0x60] sm:%s476]
                %498 = vst [vmem:[%s484 + $0x30] sm:%s476] %v497
                %v499 = vld [vmem:[%s483 + $0x70] sm:%s476]
                %500 = vst [vmem:[%s484 + $0x38] sm:%s476] %v499
              $region111: #{gnni_apply.1} parent=105 // loop_footer
                %s482 = sadd.s32 1, %s478
              $region112: #{gnni_apply.1} parent=105 // loop_footer_branch
                %477 = sbr.rel target = $region108
              $region113: #{gnni_apply.1} parent=105 // loop_exit
                _
            $region106: #{gnni_apply.1} parent=97 // pred_fallthru
              _
          $region98: #{gnni_apply.1} parent=93 // pred_fallthru
            _
          %529 = vnop
        $region94: #{gnni_apply.1} parent=51 // pred_fallthru
          _
        // Predicated region
        $region129: #{gnni_apply.1} parent=51 // pred_check
          %p530 = pneg %p284
        $region130: #{gnni_apply.1} parent=51 // pred_check_branch
          %532 = sbr.rel (%p530) target = $region132
        $region131: #{gnni_apply.1} parent=51 // pred_region
          %p533 = scmp.lt.s32.totalorder %s23, 1
          %s534 = scalar_select %p533, %s23, 1
          %s535 = smul.addr %s534, 8
          %s536 = scalar_lea.vmem %s11, %s535
        $region132: #{gnni_apply.1} parent=51 // pred_fallthru
          _
      $region52: #{gnni_apply.1} parent=5 // pred_fallthru
        _
      %p537 = scmp.le.s32.totalorder 1, %s23
      %p538 = scmp.lt.s32.totalorder %s23, 3
      %p539 = pnand %p537, %p538
      %p540 = pneg %p539
      // Predicated region
      $region133: #{gnni_apply.1} parent=5 // pred_check
        _
      $region134: #{gnni_apply.1} parent=5 // pred_check_branch
        %542 = sbr.rel (%p539) target = $region136
      $region135: #{gnni_apply.1} parent=5 // pred_region
        %s543 = ssub.s32 %s23, 1
        // Predicated region
        $region137: #{gnni_apply.1} parent=135 // pred_check
          %p544 = pneg %p44
        $region138: #{gnni_apply.1} parent=135 // pred_check_branch
          %546 = sbr.rel (%p544) target = $region140
        $region139: #{gnni_apply.1} parent=135 // pred_region
          %548 = dma.done [#allocation5], 16
        $region140: #{gnni_apply.1} parent=135 // pred_fallthru
          _
        // Predicated region
        $region141: #{gnni_apply.1} parent=135 // pred_check
          %p549 = pneg %p65
        $region142: #{gnni_apply.1} parent=135 // pred_check_branch
          %551 = sbr.rel (%p549) target = $region144
        $region143: #{gnni_apply.1} parent=135 // pred_region
          %553 = dma.done [#allocation7], 16
        $region144: #{gnni_apply.1} parent=135 // pred_fallthru
          _
        // Predicated region
        $region145: #{gnni_apply.1} parent=135 // pred_check
          %p554 = pneg %p107
        $region146: #{gnni_apply.1} parent=135 // pred_check_branch
          %556 = sbr.rel (%p554) target = $region148
        $region147: #{gnni_apply.1} parent=135 // pred_region
          %558 = dma.done [#allocation7], 16
        $region148: #{gnni_apply.1} parent=135 // pred_fallthru
          _
        // Predicated region
        $region149: #{gnni_apply.1} parent=135 // pred_check
          %p559 = pneg %p128
        $region150: #{gnni_apply.1} parent=135 // pred_check_branch
          %561 = sbr.rel (%p559) target = $region152
        $region151: #{gnni_apply.1} parent=135 // pred_region
          %563 = dma.done [#allocation10], 16
        $region152: #{gnni_apply.1} parent=135 // pred_fallthru
          _
        %s564 = sand.u32 %s225, 1
        %s565 = sand.u32 %s225, 1
        %s566 = smul.addr %s565, 64
        %s567 = scalar_lea.vmem [#allocation11], %s566
        // Predicated region
        $region153: #{gnni_apply.1} parent=135 // pred_check
          %p568 = pneg %p238
        $region154: #{gnni_apply.1} parent=135 // pred_check_branch
          %570 = sbr.rel (%p568) target = $region156
        $region155: #{gnni_apply.1} parent=135 // pred_region
          _
        $region156: #{gnni_apply.1} parent=135 // pred_fallthru
          _
        %s571 = sand.u32 %s251, 1
        %s572 = sand.u32 %s251, 1
        %s573 = smul.addr %s572, 64
        %s574 = scalar_lea.vmem [#allocation12], %s573
        // Predicated region
        $region157: #{gnni_apply.1} parent=135 // pred_check
          %p575 = pneg %p264
        $region158: #{gnni_apply.1} parent=135 // pred_check_branch
          %577 = sbr.rel (%p575) target = $region160
        $region159: #{gnni_apply.1} parent=135 // pred_region
          _
        $region160: #{gnni_apply.1} parent=135 // pred_fallthru
          _
        %578 = sfence
        %p579 = pneg %p44
        %p580 = pneg %p41
        %p581 = pneg %p65
        %p582 = pneg %p62
        %p583 = pneg %p86
        %p584 = pneg %p83
        %p585 = pneg %p107
        %p586 = pneg %p104
        %p587 = pneg %p128
        %p588 = pneg %p125
        %p589 = pneg %p149
        %p590 = pneg %p146
        %p591 = pneg %p170
        %p592 = pneg %p167
        %p593 = pneg %p191
        %p594 = pneg %p188
        %p595 = pneg %p212
        %p596 = pneg %p209
        %s597 = sand.u32 %s225, 1
        %s598 = sand.u32 %s225, 1
        %s599 = smul.addr %s598, 64
        %s600 = scalar_lea.vmem [#allocation11], %s599
        %p601 = pneg %p238
        %p602 = pneg %p235
        %s603 = sand.u32 %s251, 1
        %s604 = sand.u32 %s251, 1
        %s605 = smul.addr %s604, 64
        %s606 = scalar_lea.vmem [#allocation12], %s605
        %p607 = pneg %p264
        %p608 = pneg %p261
        %p609 = scmp.lt.s32.totalorder %s28, 1
        %s610 = scalar_select %p609, %s28, 1
        %s611 = smul.addr %s610, 8
        %s612 = scalar_lea.vmem %s11, %s611
        %p613 = pneg %p290
        %p614 = pneg %p287
        %p615 = pneg %p316
        %p616 = pneg %p313
        %p617 = scmp.lt.s32.totalorder %s28, 1
        %s618 = scalar_select %p617, %s28, 1
        %s619 = smul.addr %s618, 8
        %s620 = scalar_lea.vmem %s12, %s619
        %p621 = scmp.lt.s32.totalorder %s28, 1
        %s622 = scalar_select %p621, %s28, 1
        %s623 = smul.addr %s622, 8
        %s624 = scalar_lea.vmem %s11, %s623
        %p625 = scmp.lt.s32.totalorder %s28, 1
        %s626 = scalar_select %p625, %s28, 1
        %s627 = smul.addr %s626, 8
        %s628 = scalar_lea.vmem %s12, %s627
        %s629 = sld [smem:[#allocation4]]
        %s630 = sld [smem:[#allocation4 + $0x1]]
        %s631 = sld [smem:[#allocation4 + $0x2]]
        %s632 = sld [smem:[#allocation4 + $0x3]]
        %s633 = sld [smem:[#allocation4 + $0x4]]
        %s634 = sld [smem:[#allocation4 + $0x5]]
        %s635 = sld [smem:[#allocation4 + $0x6]]
        %s636 = sld [smem:[#allocation4 + $0x7]]
        %s637 = sld [smem:[#allocation4 + $0x8]]
        %s638 = sld [smem:[#allocation4 + $0x9]]
        %s639 = sld [smem:[#allocation6]]
        %s640 = sld [smem:[#allocation6 + $0x1]]
        %s641 = sld [smem:[#allocation6 + $0x2]]
        %s642 = sld [smem:[#allocation6 + $0x3]]
        %s643 = sld [smem:[#allocation6 + $0x4]]
        %s644 = sld [smem:[#allocation6 + $0x5]]
        %s645 = sld [smem:[#allocation6 + $0x6]]
        %s646 = sld [smem:[#allocation6 + $0x7]]
        %s647 = sld [smem:[#allocation6 + $0x8]]
        %s648 = sld [smem:[#allocation6 + $0x9]]
        %s649 = sld [smem:[#allocation2]]
        %s650 = sld [smem:[#allocation8]]
        %s651 = sld [smem:[#allocation8 + $0x1]]
        %s652 = sld [smem:[#allocation8 + $0x2]]
        %s653 = sld [smem:[#allocation8 + $0x3]]
        %s654 = sld [smem:[#allocation8 + $0x4]]
        %s655 = sld [smem:[#allocation8 + $0x5]]
        %s656 = sld [smem:[#allocation8 + $0x6]]
        %s657 = sld [smem:[#allocation8 + $0x7]]
        %s658 = sld [smem:[#allocation8 + $0x8]]
        %s659 = sld [smem:[#allocation8 + $0x9]]
        %s660 = sld [smem:[#allocation9]]
        %s661 = sld [smem:[#allocation9 + $0x1]]
        %s662 = sld [smem:[#allocation9 + $0x2]]
        %s663 = sld [smem:[#allocation9 + $0x3]]
        %s664 = sld [smem:[#allocation9 + $0x4]]
        %s665 = sld [smem:[#allocation9 + $0x5]]
        %s666 = sld [smem:[#allocation9 + $0x6]]
        %s667 = sld [smem:[#allocation9 + $0x7]]
        %s668 = sld [smem:[#allocation9 + $0x8]]
        %s669 = sld [smem:[#allocation9 + $0x9]]
        %s670 = sld [smem:[#allocation3]]
        loop: start=0, step=1, limit=25
        $region161: #{gnni_apply.1} parent=135 // loop_pre_header
          _
        $region162: #{gnni_apply.1} parent=135 // loop_header
          %s672 = sphi 0, %s676
          %p673 = scmp.ge.s32.totalorder %s672, 25
          %v677 = vphi 0.0, %v1205
          %v678 = vphi 0.0, %v1206
          %v679 = vphi 0.0, %v1207
          %v680 = vphi 0.0, %v1208
          %v681 = vphi 0.0, %v1209
          %v682 = vphi 0.0, %v1210
          %v683 = vphi 0.0, %v1211
          %v684 = vphi 0.0, %v1212
        $region163: #{gnni_apply.1} parent=135 // loop_header_branch
          %675 = sbr.rel (%p673) target = $region167
        $region164: #{gnni_apply.1} parent=135 // loop_body
          %v685 = vld [vmem:[%s6] sm:$0xff]
          %v686 = vld [vmem:[%s6 + $0x8] sm:$0xff]
          %v687 = vld [vmem:[%s6 + $0x10] sm:$0xff]
          %v688 = vld [vmem:[%s6 + $0x18] sm:$0xff]
          %v689 = vld [vmem:[%s6 + $0x20] sm:$0xff]
          %v690 = vld [vmem:[%s6 + $0x28] sm:$0xff]
          %v691 = vld [vmem:[%s6 + $0x30] sm:$0xff]
          %v692 = vld [vmem:[%s6 + $0x38] sm:$0xff]
          %v693 = vld [vmem:[%s567] sm:$0xff]
          %v694 = vld [vmem:[%s567 + $0x8] sm:$0xff]
          %v695 = vld [vmem:[%s567 + $0x10] sm:$0xff]
          %v696 = vld [vmem:[%s567 + $0x18] sm:$0xff]
          %v697 = vld [vmem:[%s567 + $0x20] sm:$0xff]
          %v698 = vld [vmem:[%s567 + $0x28] sm:$0xff]
          %v699 = vld [vmem:[%s567 + $0x30] sm:$0xff]
          %v700 = vld [vmem:[%s567 + $0x38] sm:$0xff]
          %vm701 = vcmask 523264
          %v703 = vsel %vm701, %v685, 0
          %v706 = vsel %vm701, %v686, 0
          %v709 = vsel %vm701, %v687, 0
          %v712 = vsel %vm701, %v688, 0
          %v715 = vsel %vm701, %v689, 0
          %v718 = vsel %vm701, %v690, 0
          %v721 = vsel %vm701, %v691, 0
          %v724 = vsel %vm701, %v692, 0
          %726 = vmatpush.msra.mxu0 0.0
          %727 = vmatpush.msra.mxu0 0.0
          %728 = vmatpush.msra.mxu0 0.0
          %729 = vmatpush.msra.mxu0 0.0
          %730 = vmatpush.msra.mxu0 0.0
          %731 = vmatpush.msra.mxu0 0.0
          %732 = vmatpush.msra.mxu0 0.0
          %733 = vmatpush.msra.mxu0 0.0
          %734 = vmatpush.msra.mxu0 %v684
          %735 = vmatpush.msra.mxu0 %v683
          %736 = vmatpush.msra.mxu0 %v682
          %737 = vmatpush.msra.mxu0 %v681
          %738 = vmatpush.msra.mxu0 %v680
          %739 = vmatpush.msra.mxu0 %v679
          %740 = vmatpush.msra.mxu0 %v678
          %741 = vmatpush.msra.mxu0 %v677
          %742 = vmatmul.f32.gmra.mxu0 %v703
          %v743 = vpop.f32.mrf.mxu0
          %v744 = vadd.f32 %v693, %v743
          %745 = vmatmul.f32.gmra.mxu0 %v706
          %v746 = vpop.f32.mrf.mxu0
          %v747 = vadd.f32 %v694, %v746
          %748 = vmatmul.f32.gmra.mxu0 %v709
          %v749 = vpop.f32.mrf.mxu0
          %v750 = vadd.f32 %v695, %v749
          %751 = vmatmul.f32.gmra.mxu0 %v712
          %v752 = vpop.f32.mrf.mxu0
          %v753 = vadd.f32 %v696, %v752
          %754 = vmatmul.f32.gmra.mxu0 %v715
          %v755 = vpop.f32.mrf.mxu0
          %v756 = vadd.f32 %v697, %v755
          %757 = vmatmul.f32.gmra.mxu0 %v718
          %v758 = vpop.f32.mrf.mxu0
          %v759 = vadd.f32 %v698, %v758
          %760 = vmatmul.f32.gmra.mxu0 %v721
          %v761 = vpop.f32.mrf.mxu0
          %v762 = vadd.f32 %v699, %v761
          %763 = vmatmul.f32.gmra.mxu0 %v724
          %v764 = vpop.f32.mrf.mxu0
          %v765 = vadd.f32 %v700, %v764
          %766 = vdwg.mxu0
          %v767 = vtanh.pop %v744
          %v768 = vtanh.pop %v747
          %v769 = vtanh.pop %v750
          %v770 = vtanh.pop %v753
          %v771 = vtanh.pop %v756
          %v772 = vtanh.pop %v759
          %v773 = vtanh.pop %v762
          %v774 = vtanh.pop %v765
          %v775 = vld [vmem:[%s7] sm:$0xff]
          %v776 = vld [vmem:[%s7 + $0x8] sm:$0xff]
          %v777 = vld [vmem:[%s7 + $0x10] sm:$0xff]
          %v778 = vld [vmem:[%s7 + $0x18] sm:$0xff]
          %v779 = vld [vmem:[%s7 + $0x20] sm:$0xff]
          %v780 = vld [vmem:[%s7 + $0x28] sm:$0xff]
          %v781 = vld [vmem:[%s7 + $0x30] sm:$0xff]
          %v782 = vld [vmem:[%s7 + $0x38] sm:$0xff]
          %v784 = vsel %vm701, %v775, 0
          %v787 = vsel %vm701, %v776, 0
          %v790 = vsel %vm701, %v777, 0
          %v793 = vsel %vm701, %v778, 0
          %v796 = vsel %vm701, %v779, 0
          %v799 = vsel %vm701, %v780, 0
          %v802 = vsel %vm701, %v781, 0
          %v805 = vsel %vm701, %v782, 0
          %807 = vmatpush.msra.mxu0 0.0
          %808 = vmatpush.msra.mxu0 0.0
          %809 = vmatpush.msra.mxu0 0.0
          %810 = vmatpush.msra.mxu0 0.0
          %811 = vmatpush.msra.mxu0 0.0
          %812 = vmatpush.msra.mxu0 0.0
          %813 = vmatpush.msra.mxu0 0.0
          %814 = vmatpush.msra.mxu0 0.0
          %815 = vmatpush.msra.mxu0 %v774
          %816 = vmatpush.msra.mxu0 %v773
          %817 = vmatpush.msra.mxu0 %v772
          %818 = vmatpush.msra.mxu0 %v771
          %819 = vmatpush.msra.mxu0 %v770
          %820 = vmatpush.msra.mxu0 %v769
          %821 = vmatpush.msra.mxu0 %v768
          %822 = vmatpush.msra.mxu0 %v767
          %823 = vmatmul.f32.gmra.mxu0 %v784
          %v824 = vpop.f32.mrf.mxu0
          %v825 = vadd.f32 0.0, %v824
          %826 = vmatmul.f32.gmra.mxu0 %v787
          %v827 = vpop.f32.mrf.mxu0
          %v828 = vadd.f32 0.0, %v827
          %829 = vmatmul.f32.gmra.mxu0 %v790
          %v830 = vpop.f32.mrf.mxu0
          %v831 = vadd.f32 0.0, %v830
          %832 = vmatmul.f32.gmra.mxu0 %v793
          %v833 = vpop.f32.mrf.mxu0
          %v834 = vadd.f32 0.0, %v833
          %835 = vmatmul.f32.gmra.mxu0 %v796
          %v836 = vpop.f32.mrf.mxu0
          %v837 = vadd.f32 0.0, %v836
          %838 = vmatmul.f32.gmra.mxu0 %v799
          %v839 = vpop.f32.mrf.mxu0
          %v840 = vadd.f32 0.0, %v839
          %841 = vmatmul.f32.gmra.mxu0 %v802
          %v842 = vpop.f32.mrf.mxu0
          %v843 = vadd.f32 0.0, %v842
          %844 = vmatmul.f32.gmra.mxu0 %v805
          %v845 = vpop.f32.mrf.mxu0
          %v846 = vadd.f32 0.0, %v845
          %847 = vdwg.mxu0
          %v848 = vstv %s649
          %v849 = vstv %s629
          %v850 = vadd.f32 %v825, %v849
          %v851 = vadd.f32 %v828, %v849
          %v852 = vadd.f32 %v831, %v849
          %v853 = vadd.f32 %v834, %v849
          %v854 = vadd.f32 %v837, %v849
          %v855 = vadd.f32 %v840, %v849
          %v856 = vadd.f32 %v843, %v849
          %v857 = vadd.f32 %v846, %v849
          %v858 = vmin.f32 %v850, 0.0
          %v859 = vmin.f32 %v851, 0.0
          %v860 = vmin.f32 %v852, 0.0
          %v861 = vmin.f32 %v853, 0.0
          %v862 = vmin.f32 %v854, 0.0
          %v863 = vmin.f32 %v855, 0.0
          %v864 = vmin.f32 %v856, 0.0
          %v865 = vmin.f32 %v857, 0.0
          %v866 = vstv %s639
          %v867 = vmul.f32 %v858, %v866
          %v868 = vmul.f32 %v859, %v866
          %v869 = vmul.f32 %v860, %v866
          %v870 = vmul.f32 %v861, %v866
          %v871 = vmul.f32 %v862, %v866
          %v872 = vmul.f32 %v863, %v866
          %v873 = vmul.f32 %v864, %v866
          %v874 = vmul.f32 %v865, %v866
          %v875 = vadd.f32 %v848, %v867
          %v876 = vadd.f32 %v848, %v868
          %v877 = vadd.f32 %v848, %v869
          %v878 = vadd.f32 %v848, %v870
          %v879 = vadd.f32 %v848, %v871
          %v880 = vadd.f32 %v848, %v872
          %v881 = vadd.f32 %v848, %v873
          %v882 = vadd.f32 %v848, %v874
          %v883 = vstv %s630
          %v884 = vadd.f32 %v825, %v883
          %v885 = vadd.f32 %v828, %v883
          %v886 = vadd.f32 %v831, %v883
          %v887 = vadd.f32 %v834, %v883
          %v888 = vadd.f32 %v837, %v883
          %v889 = vadd.f32 %v840, %v883
          %v890 = vadd.f32 %v843, %v883
          %v891 = vadd.f32 %v846, %v883
          %v892 = vmin.f32 %v884, 0.0
          %v893 = vmin.f32 %v885, 0.0
          %v894 = vmin.f32 %v886, 0.0
          %v895 = vmin.f32 %v887, 0.0
          %v896 = vmin.f32 %v888, 0.0
          %v897 = vmin.f32 %v889, 0.0
          %v898 = vmin.f32 %v890, 0.0
          %v899 = vmin.f32 %v891, 0.0
          %v900 = vstv %s640
          %v901 = vmul.f32 %v892, %v900
          %v902 = vmul.f32 %v893, %v900
          %v903 = vmul.f32 %v894, %v900
          %v904 = vmul.f32 %v895, %v900
          %v905 = vmul.f32 %v896, %v900
          %v906 = vmul.f32 %v897, %v900
          %v907 = vmul.f32 %v898, %v900
          %v908 = vmul.f32 %v899, %v900
          %v909 = vadd.f32 %v875, %v901
          %v910 = vadd.f32 %v876, %v902
          %v911 = vadd.f32 %v877, %v903
          %v912 = vadd.f32 %v878, %v904
          %v913 = vadd.f32 %v879, %v905
          %v914 = vadd.f32 %v880, %v906
          %v915 = vadd.f32 %v881, %v907
          %v916 = vadd.f32 %v882, %v908
          %v917 = vstv %s631
          %v918 = vadd.f32 %v825, %v917
          %v919 = vadd.f32 %v828, %v917
          %v920 = vadd.f32 %v831, %v917
          %v921 = vadd.f32 %v834, %v917
          %v922 = vadd.f32 %v837, %v917
          %v923 = vadd.f32 %v840, %v917
          %v924 = vadd.f32 %v843, %v917
          %v925 = vadd.f32 %v846, %v917
          %v926 = vmax.f32 %v918, 0.0
          %v927 = vmax.f32 %v919, 0.0
          %v928 = vmax.f32 %v920, 0.0
          %v929 = vmax.f32 %v921, 0.0
          %v930 = vmax.f32 %v922, 0.0
          %v931 = vmax.f32 %v923, 0.0
          %v932 = vmax.f32 %v924, 0.0
          %v933 = vmax.f32 %v925, 0.0
          %v934 = vstv %s641
          %v935 = vmul.f32 %v926, %v934
          %v936 = vmul.f32 %v927, %v934
          %v937 = vmul.f32 %v928, %v934
          %v938 = vmul.f32 %v929, %v934
          %v939 = vmul.f32 %v930, %v934
          %v940 = vmul.f32 %v931, %v934
          %v941 = vmul.f32 %v932, %v934
          %v942 = vmul.f32 %v933, %v934
          %v943 = vadd.f32 %v909, %v935
          %v944 = vadd.f32 %v910, %v936
          %v945 = vadd.f32 %v911, %v937
          %v946 = vadd.f32 %v912, %v938
          %v947 = vadd.f32 %v913, %v939
          %v948 = vadd.f32 %v914, %v940
          %v949 = vadd.f32 %v915, %v941
          %v950 = vadd.f32 %v916, %v942
          %v951 = vstv %s632
          %v952 = vadd.f32 %v825, %v951
          %v953 = vadd.f32 %v828, %v951
          %v954 = vadd.f32 %v831, %v951
          %v955 = vadd.f32 %v834, %v951
          %v956 = vadd.f32 %v837, %v951
          %v957 = vadd.f32 %v840, %v951
          %v958 = vadd.f32 %v843, %v951
          %v959 = vadd.f32 %v846, %v951
          %v960 = vmin.f32 %v952, 0.0
          %v961 = vmin.f32 %v953, 0.0
          %v962 = vmin.f32 %v954, 0.0
          %v963 = vmin.f32 %v955, 0.0
          %v964 = vmin.f32 %v956, 0.0
          %v965 = vmin.f32 %v957, 0.0
          %v966 = vmin.f32 %v958, 0.0
          %v967 = vmin.f32 %v959, 0.0
          %v968 = vstv %s642
          %v969 = vmul.f32 %v960, %v968
          %v970 = vmul.f32 %v961, %v968
          %v971 = vmul.f32 %v962, %v968
          %v972 = vmul.f32 %v963, %v968
          %v973 = vmul.f32 %v964, %v968
          %v974 = vmul.f32 %v965, %v968
          %v975 = vmul.f32 %v966, %v968
          %v976 = vmul.f32 %v967, %v968
          %v977 = vadd.f32 %v943, %v969
          %v978 = vadd.f32 %v944, %v970
          %v979 = vadd.f32 %v945, %v971
          %v980 = vadd.f32 %v946, %v972
          %v981 = vadd.f32 %v947, %v973
          %v982 = vadd.f32 %v948, %v974
          %v983 = vadd.f32 %v949, %v975
          %v984 = vadd.f32 %v950, %v976
          %v985 = vstv %s633
          %v986 = vadd.f32 %v825, %v985
          %v987 = vadd.f32 %v828, %v985
          %v988 = vadd.f32 %v831, %v985
          %v989 = vadd.f32 %v834, %v985
          %v990 = vadd.f32 %v837, %v985
          %v991 = vadd.f32 %v840, %v985
          %v992 = vadd.f32 %v843, %v985
          %v993 = vadd.f32 %v846, %v985
          %v994 = vmin.f32 %v986, 0.0
          %v995 = vmin.f32 %v987, 0.0
          %v996 = vmin.f32 %v988, 0.0
          %v997 = vmin.f32 %v989, 0.0
          %v998 = vmin.f32 %v990, 0.0
          %v999 = vmin.f32 %v991, 0.0
          %v1000 = vmin.f32 %v992, 0.0
          %v1001 = vmin.f32 %v993, 0.0
          %v1002 = vstv %s643
          %v1003 = vmul.f32 %v994, %v1002
          %v1004 = vmul.f32 %v995, %v1002
          %v1005 = vmul.f32 %v996, %v1002
          %v1006 = vmul.f32 %v997, %v1002
          %v1007 = vmul.f32 %v998, %v1002
          %v1008 = vmul.f32 %v999, %v1002
          %v1009 = vmul.f32 %v1000, %v1002
          %v1010 = vmul.f32 %v1001, %v1002
          %v1011 = vadd.f32 %v977, %v1003
          %v1012 = vadd.f32 %v978, %v1004
          %v1013 = vadd.f32 %v979, %v1005
          %v1014 = vadd.f32 %v980, %v1006
          %v1015 = vadd.f32 %v981, %v1007
          %v1016 = vadd.f32 %v982, %v1008
          %v1017 = vadd.f32 %v983, %v1009
          %v1018 = vadd.f32 %v984, %v1010
          %v1019 = vstv %s634
          %v1020 = vadd.f32 %v825, %v1019
          %v1021 = vadd.f32 %v828, %v1019
          %v1022 = vadd.f32 %v831, %v1019
          %v1023 = vadd.f32 %v834, %v1019
          %v1024 = vadd.f32 %v837, %v1019
          %v1025 = vadd.f32 %v840, %v1019
          %v1026 = vadd.f32 %v843, %v1019
          %v1027 = vadd.f32 %v846, %v1019
          %v1028 = vmin.f32 %v1020, 0.0
          %v1029 = vmin.f32 %v1021, 0.0
          %v1030 = vmin.f32 %v1022, 0.0
          %v1031 = vmin.f32 %v1023, 0.0
          %v1032 = vmin.f32 %v1024, 0.0
          %v1033 = vmin.f32 %v1025, 0.0
          %v1034 = vmin.f32 %v1026, 0.0
          %v1035 = vmin.f32 %v1027, 0.0
          %v1036 = vstv %s644
          %v1037 = vmul.f32 %v1028, %v1036
          %v1038 = vmul.f32 %v1029, %v1036
          %v1039 = vmul.f32 %v1030, %v1036
          %v1040 = vmul.f32 %v1031, %v1036
          %v1041 = vmul.f32 %v1032, %v1036
          %v1042 = vmul.f32 %v1033, %v1036
          %v1043 = vmul.f32 %v1034, %v1036
          %v1044 = vmul.f32 %v1035, %v1036
          %v1045 = vadd.f32 %v1011, %v1037
          %v1046 = vadd.f32 %v1012, %v1038
          %v1047 = vadd.f32 %v1013, %v1039
          %v1048 = vadd.f32 %v1014, %v1040
          %v1049 = vadd.f32 %v1015, %v1041
          %v1050 = vadd.f32 %v1016, %v1042
          %v1051 = vadd.f32 %v1017, %v1043
          %v1052 = vadd.f32 %v1018, %v1044
          %v1053 = vstv %s635
          %v1054 = vadd.f32 %v825, %v1053
          %v1055 = vadd.f32 %v828, %v1053
          %v1056 = vadd.f32 %v831, %v1053
          %v1057 = vadd.f32 %v834, %v1053
          %v1058 = vadd.f32 %v837, %v1053
          %v1059 = vadd.f32 %v840, %v1053
          %v1060 = vadd.f32 %v843, %v1053
          %v1061 = vadd.f32 %v846, %v1053
          %v1062 = vmin.f32 %v1054, 0.0
          %v1063 = vmin.f32 %v1055, 0.0
          %v1064 = vmin.f32 %v1056, 0.0
          %v1065 = vmin.f32 %v1057, 0.0
          %v1066 = vmin.f32 %v1058, 0.0
          %v1067 = vmin.f32 %v1059, 0.0
          %v1068 = vmin.f32 %v1060, 0.0
          %v1069 = vmin.f32 %v1061, 0.0
          %v1070 = vstv %s645
          %v1071 = vmul.f32 %v1062, %v1070
          %v1072 = vmul.f32 %v1063, %v1070
          %v1073 = vmul.f32 %v1064, %v1070
          %v1074 = vmul.f32 %v1065, %v1070
          %v1075 = vmul.f32 %v1066, %v1070
          %v1076 = vmul.f32 %v1067, %v1070
          %v1077 = vmul.f32 %v1068, %v1070
          %v1078 = vmul.f32 %v1069, %v1070
          %v1079 = vadd.f32 %v1045, %v1071
          %v1080 = vadd.f32 %v1046, %v1072
          %v1081 = vadd.f32 %v1047, %v1073
          %v1082 = vadd.f32 %v1048, %v1074
          %v1083 = vadd.f32 %v1049, %v1075
          %v1084 = vadd.f32 %v1050, %v1076
          %v1085 = vadd.f32 %v1051, %v1077
          %v1086 = vadd.f32 %v1052, %v1078
          %v1087 = vstv %s636
          %v1088 = vadd.f32 %v825, %v1087
          %v1089 = vadd.f32 %v828, %v1087
          %v1090 = vadd.f32 %v831, %v1087
          %v1091 = vadd.f32 %v834, %v1087
          %v1092 = vadd.f32 %v837, %v1087
          %v1093 = vadd.f32 %v840, %v1087
          %v1094 = vadd.f32 %v843, %v1087
          %v1095 = vadd.f32 %v846, %v1087
          %v1096 = vmax.f32 %v1088, 0.0
          %v1097 = vmax.f32 %v1089, 0.0
          %v1098 = vmax.f32 %v1090, 0.0
          %v1099 = vmax.f32 %v1091, 0.0
          %v1100 = vmax.f32 %v1092, 0.0
          %v1101 = vmax.f32 %v1093, 0.0
          %v1102 = vmax.f32 %v1094, 0.0
          %v1103 = vmax.f32 %v1095, 0.0
          %v1104 = vstv %s646
          %v1105 = vmul.f32 %v1096, %v1104
          %v1106 = vmul.f32 %v1097, %v1104
          %v1107 = vmul.f32 %v1098, %v1104
          %v1108 = vmul.f32 %v1099, %v1104
          %v1109 = vmul.f32 %v1100, %v1104
          %v1110 = vmul.f32 %v1101, %v1104
          %v1111 = vmul.f32 %v1102, %v1104
          %v1112 = vmul.f32 %v1103, %v1104
          %v1113 = vadd.f32 %v1079, %v1105
          %v1114 = vadd.f32 %v1080, %v1106
          %v1115 = vadd.f32 %v1081, %v1107
          %v1116 = vadd.f32 %v1082, %v1108
          %v1117 = vadd.f32 %v1083, %v1109
          %v1118 = vadd.f32 %v1084, %v1110
          %v1119 = vadd.f32 %v1085, %v1111
          %v1120 = vadd.f32 %v1086, %v1112
          %v1121 = vstv %s637
          %v1122 = vadd.f32 %v825, %v1121
          %v1123 = vadd.f32 %v828, %v1121
          %v1124 = vadd.f32 %v831, %v1121
          %v1125 = vadd.f32 %v834, %v1121
          %v1126 = vadd.f32 %v837, %v1121
          %v1127 = vadd.f32 %v840, %v1121
          %v1128 = vadd.f32 %v843, %v1121
          %v1129 = vadd.f32 %v846, %v1121
          %v1130 = vmin.f32 %v1122, 0.0
          %v1131 = vmin.f32 %v1123, 0.0
          %v1132 = vmin.f32 %v1124, 0.0
          %v1133 = vmin.f32 %v1125, 0.0
          %v1134 = vmin.f32 %v1126, 0.0
          %v1135 = vmin.f32 %v1127, 0.0
          %v1136 = vmin.f32 %v1128, 0.0
          %v1137 = vmin.f32 %v1129, 0.0
          %v1138 = vstv %s647
          %v1139 = vmul.f32 %v1130, %v1138
          %v1140 = vmul.f32 %v1131, %v1138
          %v1141 = vmul.f32 %v1132, %v1138
          %v1142 = vmul.f32 %v1133, %v1138
          %v1143 = vmul.f32 %v1134, %v1138
          %v1144 = vmul.f32 %v1135, %v1138
          %v1145 = vmul.f32 %v1136, %v1138
          %v1146 = vmul.f32 %v1137, %v1138
          %v1147 = vadd.f32 %v1113, %v1139
          %v1148 = vadd.f32 %v1114, %v1140
          %v1149 = vadd.f32 %v1115, %v1141
          %v1150 = vadd.f32 %v1116, %v1142
          %v1151 = vadd.f32 %v1117, %v1143
          %v1152 = vadd.f32 %v1118, %v1144
          %v1153 = vadd.f32 %v1119, %v1145
          %v1154 = vadd.f32 %v1120, %v1146
          %v1155 = vstv %s638
          %v1156 = vadd.f32 %v825, %v1155
          %v1157 = vadd.f32 %v828, %v1155
          %v1158 = vadd.f32 %v831, %v1155
          %v1159 = vadd.f32 %v834, %v1155
          %v1160 = vadd.f32 %v837, %v1155
          %v1161 = vadd.f32 %v840, %v1155
          %v1162 = vadd.f32 %v843, %v1155
          %v1163 = vadd.f32 %v846, %v1155
          %v1164 = vmax.f32 %v1156, 0.0
          %v1165 = vmax.f32 %v1157, 0.0
          %v1166 = vmax.f32 %v1158, 0.0
          %v1167 = vmax.f32 %v1159, 0.0
          %v1168 = vmax.f32 %v1160, 0.0
          %v1169 = vmax.f32 %v1161, 0.0
          %v1170 = vmax.f32 %v1162, 0.0
          %v1171 = vmax.f32 %v1163, 0.0
          %v1172 = vstv %s648
          %v1173 = vmul.f32 %v1164, %v1172
          %v1174 = vmul.f32 %v1165, %v1172
          %v1175 = vmul.f32 %v1166, %v1172
          %v1176 = vmul.f32 %v1167, %v1172
          %v1177 = vmul.f32 %v1168, %v1172
          %v1178 = vmul.f32 %v1169, %v1172
          %v1179 = vmul.f32 %v1170, %v1172
          %v1180 = vmul.f32 %v1171, %v1172
          %v1181 = vadd.f32 %v1147, %v1173
          %v1182 = vadd.f32 %v1148, %v1174
          %v1183 = vadd.f32 %v1149, %v1175
          %v1184 = vadd.f32 %v1150, %v1176
          %v1185 = vadd.f32 %v1151, %v1177
          %v1186 = vadd.f32 %v1152, %v1178
          %v1187 = vadd.f32 %v1153, %v1179
          %v1188 = vadd.f32 %v1154, %v1180
          %v1189 = vld [vmem:[%s574] sm:$0xff]
          %v1190 = vld [vmem:[%s574 + $0x8] sm:$0xff]
          %v1191 = vld [vmem:[%s574 + $0x10] sm:$0xff]
          %v1192 = vld [vmem:[%s574 + $0x18] sm:$0xff]
          %v1193 = vld [vmem:[%s574 + $0x20] sm:$0xff]
          %v1194 = vld [vmem:[%s574 + $0x28] sm:$0xff]
          %v1195 = vld [vmem:[%s574 + $0x30] sm:$0xff]
          %v1196 = vld [vmem:[%s574 + $0x38] sm:$0xff]
          %v1197 = vmul.f32 %v1181, %v1189
          %v1198 = vmul.f32 %v1182, %v1190
          %v1199 = vmul.f32 %v1183, %v1191
          %v1200 = vmul.f32 %v1184, %v1192
          %v1201 = vmul.f32 %v1185, %v1193
          %v1202 = vmul.f32 %v1186, %v1194
          %v1203 = vmul.f32 %v1187, %v1195
          %v1204 = vmul.f32 %v1188, %v1196
          %v1205 = vadd.f32 %v1197, %v677
          %v1206 = vadd.f32 %v1198, %v678
          %v1207 = vadd.f32 %v1199, %v679
          %v1208 = vadd.f32 %v1200, %v680
          %v1209 = vadd.f32 %v1201, %v681
          %v1210 = vadd.f32 %v1202, %v682
          %v1211 = vadd.f32 %v1203, %v683
          %v1212 = vadd.f32 %v1204, %v684
        $region165: #{gnni_apply.1} parent=135 // loop_footer
          %s676 = sadd.s32 1, %s672
        $region166: #{gnni_apply.1} parent=135 // loop_footer_branch
          %671 = sbr.rel target = $region162
        $region167: #{gnni_apply.1} parent=135 // loop_exit
          _
        %v1213 = vld [vmem:[%s8] sm:$0xff]
        %v1214 = vld [vmem:[%s624] sm:$0xff]
        %vm1215 = vcmask 523264
        %v1217 = vsel %vm1215, %v1213, 0
        %1219 = vmatpush.msra.mxu0 0.0
        %1220 = vmatpush.msra.mxu0 0.0
        %1221 = vmatpush.msra.mxu0 0.0
        %1222 = vmatpush.msra.mxu0 0.0
        %1223 = vmatpush.msra.mxu0 0.0
        %1224 = vmatpush.msra.mxu0 0.0
        %1225 = vmatpush.msra.mxu0 0.0
        %1226 = vmatpush.msra.mxu0 0.0
        %1227 = vmatpush.msra.mxu0 %v684
        %1228 = vmatpush.msra.mxu0 %v683
        %1229 = vmatpush.msra.mxu0 %v682
        %1230 = vmatpush.msra.mxu0 %v681
        %1231 = vmatpush.msra.mxu0 %v680
        %1232 = vmatpush.msra.mxu0 %v679
        %1233 = vmatpush.msra.mxu0 %v678
        %1234 = vmatpush.msra.mxu0 %v677
        %1235 = vmatmul.f32.gmra.mxu0 %v1217
        %v1236 = vpop.f32.mrf.mxu0
        %v1237 = vadd.f32 %v1214, %v1236
        %1238 = vdwg.mxu0
        %v1239 = vstv %s670
        %v1240 = vstv %s650
        %v1241 = vadd.f32 %v1237, %v1240
        %v1242 = vmax.f32 %v1241, 0.0
        %v1243 = vstv %s660
        %v1244 = vmul.f32 %v1242, %v1243
        %v1245 = vadd.f32 %v1239, %v1244
        %v1246 = vstv %s651
        %v1247 = vadd.f32 %v1237, %v1246
        %v1248 = vmax.f32 %v1247, 0.0
        %v1249 = vstv %s661
        %v1250 = vmul.f32 %v1248, %v1249
        %v1251 = vadd.f32 %v1245, %v1250
        %v1252 = vstv %s652
        %v1253 = vadd.f32 %v1237, %v1252
        %v1254 = vmax.f32 %v1253, 0.0
        %v1255 = vstv %s662
        %v1256 = vmul.f32 %v1254, %v1255
        %v1257 = vadd.f32 %v1251, %v1256
        %v1258 = vstv %s653
        %v1259 = vadd.f32 %v1237, %v1258
        %v1260 = vmax.f32 %v1259, 0.0
        %v1261 = vstv %s663
        %v1262 = vmul.f32 %v1260, %v1261
        %v1263 = vadd.f32 %v1257, %v1262
        %v1264 = vstv %s654
        %v1265 = vadd.f32 %v1237, %v1264
        %v1266 = vmax.f32 %v1265, 0.0
        %v1267 = vstv %s664
        %v1268 = vmul.f32 %v1266, %v1267
        %v1269 = vadd.f32 %v1263, %v1268
        %v1270 = vstv %s655
        %v1271 = vadd.f32 %v1237, %v1270
        %v1272 = vmax.f32 %v1271, 0.0
        %v1273 = vstv %s665
        %v1274 = vmul.f32 %v1272, %v1273
        %v1275 = vadd.f32 %v1269, %v1274
        %v1276 = vstv %s656
        %v1277 = vadd.f32 %v1237, %v1276
        %v1278 = vmax.f32 %v1277, 0.0
        %v1279 = vstv %s666
        %v1280 = vmul.f32 %v1278, %v1279
        %v1281 = vadd.f32 %v1275, %v1280
        %v1282 = vstv %s657
        %v1283 = vadd.f32 %v1237, %v1282
        %v1284 = vmin.f32 %v1283, 0.0
        %v1285 = vstv %s667
        %v1286 = vmul.f32 %v1284, %v1285
        %v1287 = vadd.f32 %v1281, %v1286
        %v1288 = vstv %s658
        %v1289 = vadd.f32 %v1237, %v1288
        %v1290 = vmax.f32 %v1289, 0.0
        %v1291 = vstv %s668
        %v1292 = vmul.f32 %v1290, %v1291
        %v1293 = vadd.f32 %v1287, %v1292
        %v1294 = vstv %s659
        %v1295 = vadd.f32 %v1237, %v1294
        %v1296 = vmax.f32 %v1295, 0.0
        %v1297 = vstv %s669
        %v1298 = vmul.f32 %v1296, %v1297
        %v1299 = vadd.f32 %v1293, %v1298
        %v1300 = vand.u32 2147483647, %v1299
        %v1301 = vsub.f32 0.0, %v1300
        %v1302 = vmul.f32 %v1301, 1.442695
        %v1303 = vpow.pop %v1302
        %v1304 = vadd.f32 %v1303, 1.0
        %v1305 = vrcp.pop %v1304
        %vm1306 = vcmp.ge.f32.partialorder %v1299, 0.0
        %v1307 = vmul.f32 %v1303, %v1305
        %v1308 = vsel %vm1306, %v1307, %v1305
        %1309 = vst [vmem:[%s628] sm:$0xff] %v1308
        %p1310 = scmp.lt.s32.totalorder %s28, 1
        %s1311 = scalar_select %p1310, %s28, 1
        %s1312 = smul.addr %s1311, 8
        %s1313 = scalar_lea.vmem %s12, %s1312
        // Predicated region
        $region168: #{gnni_apply.1} parent=135 // pred_check
          %p1314 = pneg %p313
        $region169: #{gnni_apply.1} parent=135 // pred_check_branch
          %1316 = sbr.rel (%p1314) target = $region171
        $region170: #{gnni_apply.1} parent=135 // pred_region
          _
        $region171: #{gnni_apply.1} parent=135 // pred_fallthru
          _
      $region136: #{gnni_apply.1} parent=5 // pred_fallthru
        _
      %p1317 = scmp.le.s32.totalorder 2, %s23
      // Predicated region
      $region172: #{gnni_apply.1} parent=5 // pred_check
        %p1318 = pneg %p1317
      $region173: #{gnni_apply.1} parent=5 // pred_check_branch
        %1320 = sbr.rel (%p1318) target = $region175
      $region174: #{gnni_apply.1} parent=5 // pred_region
        %s1321 = ssub.s32 %s23, 2
        // Predicated region
        $region176: #{gnni_apply.1} parent=174 // pred_check
          %p1322 = pneg %p319
        $region177: #{gnni_apply.1} parent=174 // pred_check_branch
          %1324 = sbr.rel (%p1322) target = $region179
        $region178: #{gnni_apply.1} parent=174 // pred_region
          %p1325 = scmp.lt.s32.totalorder %s29, 1
          %s1326 = scalar_select %p1325, %s29, 1
          %s1327 = smul.addr %s1326, 8
          %s1328 = scalar_lea.vmem %s12, %s1327
        $region179: #{gnni_apply.1} parent=174 // pred_fallthru
          _
      $region175: #{gnni_apply.1} parent=5 // pred_fallthru
        _
    $region6: #{gnni_apply.1} parent=1 // loop_footer
      %s27 = sadd.s32 1, %s23
    $region7: #{gnni_apply.1} parent=1 // loop_footer_branch
      %22 = sbr.rel target = $region3
    $region8: #{gnni_apply.1} parent=1 // loop_exit
      _
    %1329 = vsyncpa [#allocation5], 1
    %s1330 = scalar_lea.sflag [#allocation5], 1
    %1331 = vsyncpa %s1330, 1
    %1332 = vsyncpa [#allocation7], 1
    %1333 = vsyncpa [#allocation10], 1

</llo_original>
